<compile_context>
chip_gen: v7x
topology: tpu7x:2x2x1
jax: 0.10.0
libtpu: 0.0.40
codegen_flags: <defaults>
</compile_context>

<pallas_src>
import jax
import jax.numpy as jnp
from jax import lax
from jax.experimental import pallas as pl
from jax.experimental.pallas import tpu as pltpu


# ---- packed parameter slab layout (row offsets; width 20 lanes, f32) -------
_W1_OFF = 0      # encoder1_1 weight, (3, 20)
_W2_OFF = 3      # encoder1_2 weight, (20, 20)
_W3_OFF = 23     # encoder1_3 weight, (20, 3)  (cols 3:20 zero)
_WX1_OFF = 43    # linear_x_1 weight, (3, 20)
_WX2_OFF = 46    # linear_x_2 weight, (20, 20)
_WX3_OFF = 66    # linear_x_3 weight, (20, 3)  (cols 3:20 zero)
_B_OFF = 86      # 6 bias rows: b1, b2, b3, bx1, bx2, bx3
_SLAB_ROWS = 96  # 92 used, padded to a sublane multiple of 8
_SLAB_COLS = 20


def _linearnet_kernel(x_ref, p_ref, out_ref):
    """x_ref: (N, 3) f32; p_ref: (96, 20) packed params; out_ref: (1, 4)."""
    x = x_ref[...]                                   # (N, 3)

    def wrow(r):                                     # one packed row, (1, 20)
        return p_ref[r:r + 1, :]

    def dense(cols, w_off, b_idx):
        # Exact-f32 `a @ W + b` as VPU broadcast FMAs over the K input columns.
        z = wrow(_B_OFF + b_idx)
        for k, c in enumerate(cols):
            z = z + c * wrow(w_off + k)
        return z                                     # (N, 20)

    def cols_of(a, n):                               # n lane-slices, each (N, 1)
        return [a[:, k:k + 1] for k in range(n)]

    # encoder branch: 3 -> 20 -> 20 -> 3 (tanh on the EUP between layers)
    h = jnp.tanh(dense(cols_of(x, 3), _W1_OFF, 0))
    h = jnp.tanh(dense(cols_of(h, 20), _W2_OFF, 1))
    enc = dense(cols_of(h, 20), _W3_OFF, 2)          # cols 0:3 valid, rest 0

    # reconstruction branch: 3 -> 20 -> 20 -> 3
    g = jnp.tanh(dense(cols_of(enc, 3), _WX1_OFF, 3))
    g = jnp.tanh(dense(cols_of(g, 20), _WX2_OFF, 4))
    l2 = dense(cols_of(g, 20), _WX3_OFF, 5)          # cols 0:3 valid

    # loss2_sum = ||l2 - x||_2 ** 2  (squared Frobenius norm)
    diff = l2[:, 0:3] - x
    loss2 = jnp.sum(diff * diff)

    # encoder[0, 0:3]; loss_re only needs these three values, so the scalar
    # loss math is done in the JAX wrapper (shorter critical path, fewer
    # output tiles).
    e0 = jnp.sum(enc[0:1, 0:1])
    e1 = jnp.sum(enc[0:1, 1:2])
    e2 = jnp.sum(enc[0:1, 2:3])

    # Pack the 4 scalars into a single (1, 4) output row (one writeback DMA).
    lane = lax.broadcasted_iota(jnp.int32, (1, 4), 1)
    out_ref[...] = (jnp.where(lane == 0, e0, 0.0)
                    + jnp.where(lane == 1, e1, 0.0)
                    + jnp.where(lane == 2, e2, 0.0)
                    + jnp.where(lane == 3, loss2, 0.0))


def _vmem_spec():
    return pl.BlockSpec(memory_space=pltpu.MemorySpace.VMEM)


def pack_params(params):
    """Concatenate the 12 parameter tensors into one (96, 20) f32 slab."""
    def rows(p):
        p = jnp.asarray(p, jnp.float32)
        p = p.reshape(1, -1) if p.ndim == 1 else p
        return jnp.pad(p, ((0, 0), (0, _SLAB_COLS - p.shape[1])))

    slab = jnp.concatenate(
        [rows(params["w1"]), rows(params["w2"]), rows(params["w3"]),
         rows(params["wx1"]), rows(params["wx2"]), rows(params["wx3"]),
         rows(params["b1"]), rows(params["b2"]), rows(params["b3"]),
         rows(params["bx1"]), rows(params["bx2"]), rows(params["bx3"])],
        axis=0)                                       # (92, 20)
    return jnp.pad(slab, ((0, _SLAB_ROWS - slab.shape[0]), (0, 0)))


def linearnet_forward(x, u0, params):
    """Forward pass of LinearNet; `u0` is accepted but unused (as in torch)."""
    del u0  # unused by the original forward
    slab = pack_params(params)  # NOTE: in a training loop, pack once & reuse.
    out = pl.pallas_call(
        _linearnet_kernel,
        out_shape=jax.ShapeDtypeStruct((1, 4), jnp.float32),
        in_specs=[_vmem_spec(), _vmem_spec()],
        out_specs=_vmem_spec(),
    )(x.astype(jnp.float32), slab)

    e0, e1, e2, loss2_sum = out[0, 0], out[0, 1], out[0, 2], out[0, 3]
    # loss_re only depends on encoder[0, :]; plain-JAX scalar math here is
    # fused by XLA and costs nothing.
    loss_re = (jnp.abs(e2 * e2) * 100.0
               + jnp.abs((e0 * e0 + e1 * e1) ** 2
                         - 0.01 * (e0 * e0 - e1 * e1)) * 100.0)
    loss = loss_re + loss2_sum
    return loss, e0, e2, e1, loss2_sum / 50.0


def _init_linear(key, fan_in, fan_out):
    # Deterministic init mimicking torch.nn.Linear's U(-1/sqrt(in), 1/sqrt(in)).
    kw, kb = jax.random.split(key)
    bound = 1.0 / (fan_in ** 0.5)
    w = jax.random.uniform(kw, (fan_in, fan_out), jnp.float32, -bound, bound)
    b = jax.random.uniform(kb, (1, fan_out), jnp.float32, -bound, bound)
    return w, b


def init_params(key):
    keys = jax.random.split(key, 6)
    w1, b1 = _init_linear(keys[0], 3, 20)     # encoder1_1
    w2, b2 = _init_linear(keys[1], 20, 20)    # encoder1_2
    w3, b3 = _init_linear(keys[2], 20, 3)     # encoder1_3
    wx1, bx1 = _init_linear(keys[3], 3, 20)   # linear_x_1
    wx2, bx2 = _init_linear(keys[4], 20, 20)  # linear_x_2
    wx3, bx3 = _init_linear(keys[5], 20, 3)   # linear_x_3
    return dict(w1=w1, b1=b1, w2=w2, b2=b2, w3=w3, b3=b3,
                wx1=wx1, bx1=bx1, wx2=wx2, bx2=bx2, wx3=wx3, bx3=bx3)
    # NOTE: self.params1 ([[1,0],[1,0],[1,0]]) is never used in forward.


def _reference_forward(x, params):
    # Pure-JAX reference; HIGHEST precision == effectively exact f32 matmuls,
    # matching the exact-f32 VPU arithmetic used inside the kernel.
    hi = jax.lax.Precision.HIGHEST

    def lin(a, w, b):
        return jnp.dot(a, w, precision=hi) + b

    h = jnp.tanh(lin(x, params["w1"], params["b1"]))
    h = jnp.tanh(lin(h, params["w2"], params["b2"]))
    enc = lin(h, params["w3"], params["b3"])
    g = jnp.tanh(lin(enc, params["wx1"], params["bx1"]))
    g = jnp.tanh(lin(g, params["wx2"], params["bx2"]))
    l2 = lin(g, params["wx3"], params["bx3"])
    loss2 = jnp.sum((l2 - x) ** 2)
    e0, e1, e2 = enc[0, 0], enc[0, 1], enc[0, 2]
    loss_re = (jnp.abs(e2 ** 2) * 100.0
               + jnp.abs((e0 ** 2 + e1 ** 2) ** 2
                         - 0.01 * (e0 ** 2 - e1 ** 2)) * 100.0)
    return loss_re + loss2, e0, e2, e1, loss2 / 50.0


if __name__ == "__main__":
    key = jax.random.PRNGKey(0)
    kx, ku, kp = jax.random.split(key, 3)

    N = 8
    x = jax.random.normal(kx, (N, 3), jnp.float32)
    u0 = jax.random.normal(ku, (N, 3), jnp.float32)   # unused by forward
    params = init_params(kp)

    fwd = jax.jit(linearnet_forward)
    out = fwd(x, u0, params)
    out = jax.block_until_ready(out)

    ref = _reference_forward(x, params)
    for a, b in zip(out, ref):
        assert jnp.allclose(a, b, rtol=1e-3, atol=1e-3), (a, b)

    print("KERNEL_OK")
</pallas_src>

<mosaic_0001>
module attributes {stable_mosaic.version = 11 : i64} {
  func.func @_linearnet_kernel(%arg0: memref<8x3xf32, #tpu.memory_space<vmem>>, %arg1: memref<96x20xf32, #tpu.memory_space<vmem>>, %arg2: memref<1x4xf32, #tpu.memory_space<vmem>>) attributes {dimension_semantics = [], scalar_prefetch = 0 : i64, scratch_operands = 0 : i64, tpu.core_type = #tpu.core_type<tc>} {
    %c0 = arith.constant 0 : index
    %c0_0 = arith.constant 0 : index
    %0 = vector.load %arg0[%c0, %c0_0] : memref<8x3xf32, #tpu.memory_space<vmem>>, vector<8x3xf32>
    %1 = vector.extract_strided_slice %0 {offsets = [0, 0], sizes = [8, 1], strides = [1, 1]} : vector<8x3xf32> to vector<8x1xf32>
    %2 = vector.extract_strided_slice %0 {offsets = [0, 1], sizes = [8, 1], strides = [1, 1]} : vector<8x3xf32> to vector<8x1xf32>
    %3 = vector.extract_strided_slice %0 {offsets = [0, 2], sizes = [8, 1], strides = [1, 1]} : vector<8x3xf32> to vector<8x1xf32>
    %c86 = arith.constant 86 : index
    %c0_1 = arith.constant 0 : index
    %4 = vector.load %arg1[%c86, %c0_1] : memref<96x20xf32, #tpu.memory_space<vmem>>, vector<1x20xf32>
    %c0_2 = arith.constant 0 : index
    %c0_3 = arith.constant 0 : index
    %5 = vector.load %arg1[%c0_2, %c0_3] : memref<96x20xf32, #tpu.memory_space<vmem>>, vector<1x20xf32>
    %6 = vector.broadcast %1 : vector<8x1xf32> to vector<8x20xf32>
    %7 = vector.broadcast %5 : vector<1x20xf32> to vector<8x20xf32>
    %8 = arith.mulf %6, %7 : vector<8x20xf32>
    %9 = vector.broadcast %4 : vector<1x20xf32> to vector<8x20xf32>
    %10 = arith.addf %9, %8 : vector<8x20xf32>
    %c1 = arith.constant 1 : index
    %c0_4 = arith.constant 0 : index
    %11 = vector.load %arg1[%c1, %c0_4] : memref<96x20xf32, #tpu.memory_space<vmem>>, vector<1x20xf32>
    %12 = vector.broadcast %2 : vector<8x1xf32> to vector<8x20xf32>
    %13 = vector.broadcast %11 : vector<1x20xf32> to vector<8x20xf32>
    %14 = arith.mulf %12, %13 : vector<8x20xf32>
    %15 = arith.addf %10, %14 : vector<8x20xf32>
    %c2 = arith.constant 2 : index
    %c0_5 = arith.constant 0 : index
    %16 = vector.load %arg1[%c2, %c0_5] : memref<96x20xf32, #tpu.memory_space<vmem>>, vector<1x20xf32>
    %17 = vector.broadcast %3 : vector<8x1xf32> to vector<8x20xf32>
    %18 = vector.broadcast %16 : vector<1x20xf32> to vector<8x20xf32>
    %19 = arith.mulf %17, %18 : vector<8x20xf32>
    %20 = arith.addf %15, %19 : vector<8x20xf32>
    %21 = math.tanh %20 : vector<8x20xf32>
    %22 = vector.extract_strided_slice %21 {offsets = [0, 0], sizes = [8, 1], strides = [1, 1]} : vector<8x20xf32> to vector<8x1xf32>
    %23 = vector.extract_strided_slice %21 {offsets = [0, 1], sizes = [8, 1], strides = [1, 1]} : vector<8x20xf32> to vector<8x1xf32>
    %24 = vector.extract_strided_slice %21 {offsets = [0, 2], sizes = [8, 1], strides = [1, 1]} : vector<8x20xf32> to vector<8x1xf32>
    %25 = vector.extract_strided_slice %21 {offsets = [0, 3], sizes = [8, 1], strides = [1, 1]} : vector<8x20xf32> to vector<8x1xf32>
    %26 = vector.extract_strided_slice %21 {offsets = [0, 4], sizes = [8, 1], strides = [1, 1]} : vector<8x20xf32> to vector<8x1xf32>
    %27 = vector.extract_strided_slice %21 {offsets = [0, 5], sizes = [8, 1], strides = [1, 1]} : vector<8x20xf32> to vector<8x1xf32>
    %28 = vector.extract_strided_slice %21 {offsets = [0, 6], sizes = [8, 1], strides = [1, 1]} : vector<8x20xf32> to vector<8x1xf32>
    %29 = vector.extract_strided_slice %21 {offsets = [0, 7], sizes = [8, 1], strides = [1, 1]} : vector<8x20xf32> to vector<8x1xf32>
    %30 = vector.extract_strided_slice %21 {offsets = [0, 8], sizes = [8, 1], strides = [1, 1]} : vector<8x20xf32> to vector<8x1xf32>
    %31 = vector.extract_strided_slice %21 {offsets = [0, 9], sizes = [8, 1], strides = [1, 1]} : vector<8x20xf32> to vector<8x1xf32>
    %32 = vector.extract_strided_slice %21 {offsets = [0, 10], sizes = [8, 1], strides = [1, 1]} : vector<8x20xf32> to vector<8x1xf32>
    %33 = vector.extract_strided_slice %21 {offsets = [0, 11], sizes = [8, 1], strides = [1, 1]} : vector<8x20xf32> to vector<8x1xf32>
    %34 = vector.extract_strided_slice %21 {offsets = [0, 12], sizes = [8, 1], strides = [1, 1]} : vector<8x20xf32> to vector<8x1xf32>
    %35 = vector.extract_strided_slice %21 {offsets = [0, 13], sizes = [8, 1], strides = [1, 1]} : vector<8x20xf32> to vector<8x1xf32>
    %36 = vector.extract_strided_slice %21 {offsets = [0, 14], sizes = [8, 1], strides = [1, 1]} : vector<8x20xf32> to vector<8x1xf32>
    %37 = vector.extract_strided_slice %21 {offsets = [0, 15], sizes = [8, 1], strides = [1, 1]} : vector<8x20xf32> to vector<8x1xf32>
    %38 = vector.extract_strided_slice %21 {offsets = [0, 16], sizes = [8, 1], strides = [1, 1]} : vector<8x20xf32> to vector<8x1xf32>
    %39 = vector.extract_strided_slice %21 {offsets = [0, 17], sizes = [8, 1], strides = [1, 1]} : vector<8x20xf32> to vector<8x1xf32>
    %40 = vector.extract_strided_slice %21 {offsets = [0, 18], sizes = [8, 1], strides = [1, 1]} : vector<8x20xf32> to vector<8x1xf32>
    %41 = vector.extract_strided_slice %21 {offsets = [0, 19], sizes = [8, 1], strides = [1, 1]} : vector<8x20xf32> to vector<8x1xf32>
    %c87 = arith.constant 87 : index
    %c0_6 = arith.constant 0 : index
    %42 = vector.load %arg1[%c87, %c0_6] : memref<96x20xf32, #tpu.memory_space<vmem>>, vector<1x20xf32>
    %c3 = arith.constant 3 : index
    %c0_7 = arith.constant 0 : index
    %43 = vector.load %arg1[%c3, %c0_7] : memref<96x20xf32, #tpu.memory_space<vmem>>, vector<1x20xf32>
    %44 = vector.broadcast %22 : vector<8x1xf32> to vector<8x20xf32>
    %45 = vector.broadcast %43 : vector<1x20xf32> to vector<8x20xf32>
    %46 = arith.mulf %44, %45 : vector<8x20xf32>
    %47 = vector.broadcast %42 : vector<1x20xf32> to vector<8x20xf32>
    %48 = arith.addf %47, %46 : vector<8x20xf32>
    %c4 = arith.constant 4 : index
    %c0_8 = arith.constant 0 : index
    %49 = vector.load %arg1[%c4, %c0_8] : memref<96x20xf32, #tpu.memory_space<vmem>>, vector<1x20xf32>
    %50 = vector.broadcast %23 : vector<8x1xf32> to vector<8x20xf32>
    %51 = vector.broadcast %49 : vector<1x20xf32> to vector<8x20xf32>
    %52 = arith.mulf %50, %51 : vector<8x20xf32>
    %53 = arith.addf %48, %52 : vector<8x20xf32>
    %c5 = arith.constant 5 : index
    %c0_9 = arith.constant 0 : index
    %54 = vector.load %arg1[%c5, %c0_9] : memref<96x20xf32, #tpu.memory_space<vmem>>, vector<1x20xf32>
    %55 = vector.broadcast %24 : vector<8x1xf32> to vector<8x20xf32>
    %56 = vector.broadcast %54 : vector<1x20xf32> to vector<8x20xf32>
    %57 = arith.mulf %55, %56 : vector<8x20xf32>
    %58 = arith.addf %53, %57 : vector<8x20xf32>
    %c6 = arith.constant 6 : index
    %c0_10 = arith.constant 0 : index
    %59 = vector.load %arg1[%c6, %c0_10] : memref<96x20xf32, #tpu.memory_space<vmem>>, vector<1x20xf32>
    %60 = vector.broadcast %25 : vector<8x1xf32> to vector<8x20xf32>
    %61 = vector.broadcast %59 : vector<1x20xf32> to vector<8x20xf32>
    %62 = arith.mulf %60, %61 : vector<8x20xf32>
    %63 = arith.addf %58, %62 : vector<8x20xf32>
    %c7 = arith.constant 7 : index
    %c0_11 = arith.constant 0 : index
    %64 = vector.load %arg1[%c7, %c0_11] : memref<96x20xf32, #tpu.memory_space<vmem>>, vector<1x20xf32>
    %65 = vector.broadcast %26 : vector<8x1xf32> to vector<8x20xf32>
    %66 = vector.broadcast %64 : vector<1x20xf32> to vector<8x20xf32>
    %67 = arith.mulf %65, %66 : vector<8x20xf32>
    %68 = arith.addf %63, %67 : vector<8x20xf32>
    %c8 = arith.constant 8 : index
    %c0_12 = arith.constant 0 : index
    %69 = vector.load %arg1[%c8, %c0_12] : memref<96x20xf32, #tpu.memory_space<vmem>>, vector<1x20xf32>
    %70 = vector.broadcast %27 : vector<8x1xf32> to vector<8x20xf32>
    %71 = vector.broadcast %69 : vector<1x20xf32> to vector<8x20xf32>
    %72 = arith.mulf %70, %71 : vector<8x20xf32>
    %73 = arith.addf %68, %72 : vector<8x20xf32>
    %c9 = arith.constant 9 : index
    %c0_13 = arith.constant 0 : index
    %74 = vector.load %arg1[%c9, %c0_13] : memref<96x20xf32, #tpu.memory_space<vmem>>, vector<1x20xf32>
    %75 = vector.broadcast %28 : vector<8x1xf32> to vector<8x20xf32>
    %76 = vector.broadcast %74 : vector<1x20xf32> to vector<8x20xf32>
    %77 = arith.mulf %75, %76 : vector<8x20xf32>
    %78 = arith.addf %73, %77 : vector<8x20xf32>
    %c10 = arith.constant 10 : index
    %c0_14 = arith.constant 0 : index
    %79 = vector.load %arg1[%c10, %c0_14] : memref<96x20xf32, #tpu.memory_space<vmem>>, vector<1x20xf32>
    %80 = vector.broadcast %29 : vector<8x1xf32> to vector<8x20xf32>
    %81 = vector.broadcast %79 : vector<1x20xf32> to vector<8x20xf32>
    %82 = arith.mulf %80, %81 : vector<8x20xf32>
    %83 = arith.addf %78, %82 : vector<8x20xf32>
    %c11 = arith.constant 11 : index
    %c0_15 = arith.constant 0 : index
    %84 = vector.load %arg1[%c11, %c0_15] : memref<96x20xf32, #tpu.memory_space<vmem>>, vector<1x20xf32>
    %85 = vector.broadcast %30 : vector<8x1xf32> to vector<8x20xf32>
    %86 = vector.broadcast %84 : vector<1x20xf32> to vector<8x20xf32>
    %87 = arith.mulf %85, %86 : vector<8x20xf32>
    %88 = arith.addf %83, %87 : vector<8x20xf32>
    %c12 = arith.constant 12 : index
    %c0_16 = arith.constant 0 : index
    %89 = vector.load %arg1[%c12, %c0_16] : memref<96x20xf32, #tpu.memory_space<vmem>>, vector<1x20xf32>
    %90 = vector.broadcast %31 : vector<8x1xf32> to vector<8x20xf32>
    %91 = vector.broadcast %89 : vector<1x20xf32> to vector<8x20xf32>
    %92 = arith.mulf %90, %91 : vector<8x20xf32>
    %93 = arith.addf %88, %92 : vector<8x20xf32>
    %c13 = arith.constant 13 : index
    %c0_17 = arith.constant 0 : index
    %94 = vector.load %arg1[%c13, %c0_17] : memref<96x20xf32, #tpu.memory_space<vmem>>, vector<1x20xf32>
    %95 = vector.broadcast %32 : vector<8x1xf32> to vector<8x20xf32>
    %96 = vector.broadcast %94 : vector<1x20xf32> to vector<8x20xf32>
    %97 = arith.mulf %95, %96 : vector<8x20xf32>
    %98 = arith.addf %93, %97 : vector<8x20xf32>
    %c14 = arith.constant 14 : index
    %c0_18 = arith.constant 0 : index
    %99 = vector.load %arg1[%c14, %c0_18] : memref<96x20xf32, #tpu.memory_space<vmem>>, vector<1x20xf32>
    %100 = vector.broadcast %33 : vector<8x1xf32> to vector<8x20xf32>
    %101 = vector.broadcast %99 : vector<1x20xf32> to vector<8x20xf32>
    %102 = arith.mulf %100, %101 : vector<8x20xf32>
    %103 = arith.addf %98, %102 : vector<8x20xf32>
    %c15 = arith.constant 15 : index
    %c0_19 = arith.constant 0 : index
    %104 = vector.load %arg1[%c15, %c0_19] : memref<96x20xf32, #tpu.memory_space<vmem>>, vector<1x20xf32>
    %105 = vector.broadcast %34 : vector<8x1xf32> to vector<8x20xf32>
    %106 = vector.broadcast %104 : vector<1x20xf32> to vector<8x20xf32>
    %107 = arith.mulf %105, %106 : vector<8x20xf32>
    %108 = arith.addf %103, %107 : vector<8x20xf32>
    %c16 = arith.constant 16 : index
    %c0_20 = arith.constant 0 : index
    %109 = vector.load %arg1[%c16, %c0_20] : memref<96x20xf32, #tpu.memory_space<vmem>>, vector<1x20xf32>
    %110 = vector.broadcast %35 : vector<8x1xf32> to vector<8x20xf32>
    %111 = vector.broadcast %109 : vector<1x20xf32> to vector<8x20xf32>
    %112 = arith.mulf %110, %111 : vector<8x20xf32>
    %113 = arith.addf %108, %112 : vector<8x20xf32>
    %c17 = arith.constant 17 : index
    %c0_21 = arith.constant 0 : index
    %114 = vector.load %arg1[%c17, %c0_21] : memref<96x20xf32, #tpu.memory_space<vmem>>, vector<1x20xf32>
    %115 = vector.broadcast %36 : vector<8x1xf32> to vector<8x20xf32>
    %116 = vector.broadcast %114 : vector<1x20xf32> to vector<8x20xf32>
    %117 = arith.mulf %115, %116 : vector<8x20xf32>
    %118 = arith.addf %113, %117 : vector<8x20xf32>
    %c18 = arith.constant 18 : index
    %c0_22 = arith.constant 0 : index
    %119 = vector.load %arg1[%c18, %c0_22] : memref<96x20xf32, #tpu.memory_space<vmem>>, vector<1x20xf32>
    %120 = vector.broadcast %37 : vector<8x1xf32> to vector<8x20xf32>
    %121 = vector.broadcast %119 : vector<1x20xf32> to vector<8x20xf32>
    %122 = arith.mulf %120, %121 : vector<8x20xf32>
    %123 = arith.addf %118, %122 : vector<8x20xf32>
    %c19 = arith.constant 19 : index
    %c0_23 = arith.constant 0 : index
    %124 = vector.load %arg1[%c19, %c0_23] : memref<96x20xf32, #tpu.memory_space<vmem>>, vector<1x20xf32>
    %125 = vector.broadcast %38 : vector<8x1xf32> to vector<8x20xf32>
    %126 = vector.broadcast %124 : vector<1x20xf32> to vector<8x20xf32>
    %127 = arith.mulf %125, %126 : vector<8x20xf32>
    %128 = arith.addf %123, %127 : vector<8x20xf32>
    %c20 = arith.constant 20 : index
    %c0_24 = arith.constant 0 : index
    %129 = vector.load %arg1[%c20, %c0_24] : memref<96x20xf32, #tpu.memory_space<vmem>>, vector<1x20xf32>
    %130 = vector.broadcast %39 : vector<8x1xf32> to vector<8x20xf32>
    %131 = vector.broadcast %129 : vector<1x20xf32> to vector<8x20xf32>
    %132 = arith.mulf %130, %131 : vector<8x20xf32>
    %133 = arith.addf %128, %132 : vector<8x20xf32>
    %c21 = arith.constant 21 : index
    %c0_25 = arith.constant 0 : index
    %134 = vector.load %arg1[%c21, %c0_25] : memref<96x20xf32, #tpu.memory_space<vmem>>, vector<1x20xf32>
    %135 = vector.broadcast %40 : vector<8x1xf32> to vector<8x20xf32>
    %136 = vector.broadcast %134 : vector<1x20xf32> to vector<8x20xf32>
    %137 = arith.mulf %135, %136 : vector<8x20xf32>
    %138 = arith.addf %133, %137 : vector<8x20xf32>
    %c22 = arith.constant 22 : index
    %c0_26 = arith.constant 0 : index
    %139 = vector.load %arg1[%c22, %c0_26] : memref<96x20xf32, #tpu.memory_space<vmem>>, vector<1x20xf32>
    %140 = vector.broadcast %41 : vector<8x1xf32> to vector<8x20xf32>
    %141 = vector.broadcast %139 : vector<1x20xf32> to vector<8x20xf32>
    %142 = arith.mulf %140, %141 : vector<8x20xf32>
    %143 = arith.addf %138, %142 : vector<8x20xf32>
    %144 = math.tanh %143 : vector<8x20xf32>
    %145 = vector.extract_strided_slice %144 {offsets = [0, 0], sizes = [8, 1], strides = [1, 1]} : vector<8x20xf32> to vector<8x1xf32>
    %146 = vector.extract_strided_slice %144 {offsets = [0, 1], sizes = [8, 1], strides = [1, 1]} : vector<8x20xf32> to vector<8x1xf32>
    %147 = vector.extract_strided_slice %144 {offsets = [0, 2], sizes = [8, 1], strides = [1, 1]} : vector<8x20xf32> to vector<8x1xf32>
    %148 = vector.extract_strided_slice %144 {offsets = [0, 3], sizes = [8, 1], strides = [1, 1]} : vector<8x20xf32> to vector<8x1xf32>
    %149 = vector.extract_strided_slice %144 {offsets = [0, 4], sizes = [8, 1], strides = [1, 1]} : vector<8x20xf32> to vector<8x1xf32>
    %150 = vector.extract_strided_slice %144 {offsets = [0, 5], sizes = [8, 1], strides = [1, 1]} : vector<8x20xf32> to vector<8x1xf32>
    %151 = vector.extract_strided_slice %144 {offsets = [0, 6], sizes = [8, 1], strides = [1, 1]} : vector<8x20xf32> to vector<8x1xf32>
    %152 = vector.extract_strided_slice %144 {offsets = [0, 7], sizes = [8, 1], strides = [1, 1]} : vector<8x20xf32> to vector<8x1xf32>
    %153 = vector.extract_strided_slice %144 {offsets = [0, 8], sizes = [8, 1], strides = [1, 1]} : vector<8x20xf32> to vector<8x1xf32>
    %154 = vector.extract_strided_slice %144 {offsets = [0, 9], sizes = [8, 1], strides = [1, 1]} : vector<8x20xf32> to vector<8x1xf32>
    %155 = vector.extract_strided_slice %144 {offsets = [0, 10], sizes = [8, 1], strides = [1, 1]} : vector<8x20xf32> to vector<8x1xf32>
    %156 = vector.extract_strided_slice %144 {offsets = [0, 11], sizes = [8, 1], strides = [1, 1]} : vector<8x20xf32> to vector<8x1xf32>
    %157 = vector.extract_strided_slice %144 {offsets = [0, 12], sizes = [8, 1], strides = [1, 1]} : vector<8x20xf32> to vector<8x1xf32>
    %158 = vector.extract_strided_slice %144 {offsets = [0, 13], sizes = [8, 1], strides = [1, 1]} : vector<8x20xf32> to vector<8x1xf32>
    %159 = vector.extract_strided_slice %144 {offsets = [0, 14], sizes = [8, 1], strides = [1, 1]} : vector<8x20xf32> to vector<8x1xf32>
    %160 = vector.extract_strided_slice %144 {offsets = [0, 15], sizes = [8, 1], strides = [1, 1]} : vector<8x20xf32> to vector<8x1xf32>
    %161 = vector.extract_strided_slice %144 {offsets = [0, 16], sizes = [8, 1], strides = [1, 1]} : vector<8x20xf32> to vector<8x1xf32>
    %162 = vector.extract_strided_slice %144 {offsets = [0, 17], sizes = [8, 1], strides = [1, 1]} : vector<8x20xf32> to vector<8x1xf32>
    %163 = vector.extract_strided_slice %144 {offsets = [0, 18], sizes = [8, 1], strides = [1, 1]} : vector<8x20xf32> to vector<8x1xf32>
    %164 = vector.extract_strided_slice %144 {offsets = [0, 19], sizes = [8, 1], strides = [1, 1]} : vector<8x20xf32> to vector<8x1xf32>
    %c88 = arith.constant 88 : index
    %c0_27 = arith.constant 0 : index
    %165 = vector.load %arg1[%c88, %c0_27] : memref<96x20xf32, #tpu.memory_space<vmem>>, vector<1x20xf32>
    %c23 = arith.constant 23 : index
    %c0_28 = arith.constant 0 : index
    %166 = vector.load %arg1[%c23, %c0_28] : memref<96x20xf32, #tpu.memory_space<vmem>>, vector<1x20xf32>
    %167 = vector.broadcast %145 : vector<8x1xf32> to vector<8x20xf32>
    %168 = vector.broadcast %166 : vector<1x20xf32> to vector<8x20xf32>
    %169 = arith.mulf %167, %168 : vector<8x20xf32>
    %170 = vector.broadcast %165 : vector<1x20xf32> to vector<8x20xf32>
    %171 = arith.addf %170, %169 : vector<8x20xf32>
    %c24 = arith.constant 24 : index
    %c0_29 = arith.constant 0 : index
    %172 = vector.load %arg1[%c24, %c0_29] : memref<96x20xf32, #tpu.memory_space<vmem>>, vector<1x20xf32>
    %173 = vector.broadcast %146 : vector<8x1xf32> to vector<8x20xf32>
    %174 = vector.broadcast %172 : vector<1x20xf32> to vector<8x20xf32>
    %175 = arith.mulf %173, %174 : vector<8x20xf32>
    %176 = arith.addf %171, %175 : vector<8x20xf32>
    %c25 = arith.constant 25 : index
    %c0_30 = arith.constant 0 : index
    %177 = vector.load %arg1[%c25, %c0_30] : memref<96x20xf32, #tpu.memory_space<vmem>>, vector<1x20xf32>
    %178 = vector.broadcast %147 : vector<8x1xf32> to vector<8x20xf32>
    %179 = vector.broadcast %177 : vector<1x20xf32> to vector<8x20xf32>
    %180 = arith.mulf %178, %179 : vector<8x20xf32>
    %181 = arith.addf %176, %180 : vector<8x20xf32>
    %c26 = arith.constant 26 : index
    %c0_31 = arith.constant 0 : index
    %182 = vector.load %arg1[%c26, %c0_31] : memref<96x20xf32, #tpu.memory_space<vmem>>, vector<1x20xf32>
    %183 = vector.broadcast %148 : vector<8x1xf32> to vector<8x20xf32>
    %184 = vector.broadcast %182 : vector<1x20xf32> to vector<8x20xf32>
    %185 = arith.mulf %183, %184 : vector<8x20xf32>
    %186 = arith.addf %181, %185 : vector<8x20xf32>
    %c27 = arith.constant 27 : index
    %c0_32 = arith.constant 0 : index
    %187 = vector.load %arg1[%c27, %c0_32] : memref<96x20xf32, #tpu.memory_space<vmem>>, vector<1x20xf32>
    %188 = vector.broadcast %149 : vector<8x1xf32> to vector<8x20xf32>
    %189 = vector.broadcast %187 : vector<1x20xf32> to vector<8x20xf32>
    %190 = arith.mulf %188, %189 : vector<8x20xf32>
    %191 = arith.addf %186, %190 : vector<8x20xf32>
    %c28 = arith.constant 28 : index
    %c0_33 = arith.constant 0 : index
    %192 = vector.load %arg1[%c28, %c0_33] : memref<96x20xf32, #tpu.memory_space<vmem>>, vector<1x20xf32>
    %193 = vector.broadcast %150 : vector<8x1xf32> to vector<8x20xf32>
    %194 = vector.broadcast %192 : vector<1x20xf32> to vector<8x20xf32>
    %195 = arith.mulf %193, %194 : vector<8x20xf32>
    %196 = arith.addf %191, %195 : vector<8x20xf32>
    %c29 = arith.constant 29 : index
    %c0_34 = arith.constant 0 : index
    %197 = vector.load %arg1[%c29, %c0_34] : memref<96x20xf32, #tpu.memory_space<vmem>>, vector<1x20xf32>
    %198 = vector.broadcast %151 : vector<8x1xf32> to vector<8x20xf32>
    %199 = vector.broadcast %197 : vector<1x20xf32> to vector<8x20xf32>
    %200 = arith.mulf %198, %199 : vector<8x20xf32>
    %201 = arith.addf %196, %200 : vector<8x20xf32>
    %c30 = arith.constant 30 : index
    %c0_35 = arith.constant 0 : index
    %202 = vector.load %arg1[%c30, %c0_35] : memref<96x20xf32, #tpu.memory_space<vmem>>, vector<1x20xf32>
    %203 = vector.broadcast %152 : vector<8x1xf32> to vector<8x20xf32>
    %204 = vector.broadcast %202 : vector<1x20xf32> to vector<8x20xf32>
    %205 = arith.mulf %203, %204 : vector<8x20xf32>
    %206 = arith.addf %201, %205 : vector<8x20xf32>
    %c31 = arith.constant 31 : index
    %c0_36 = arith.constant 0 : index
    %207 = vector.load %arg1[%c31, %c0_36] : memref<96x20xf32, #tpu.memory_space<vmem>>, vector<1x20xf32>
    %208 = vector.broadcast %153 : vector<8x1xf32> to vector<8x20xf32>
    %209 = vector.broadcast %207 : vector<1x20xf32> to vector<8x20xf32>
    %210 = arith.mulf %208, %209 : vector<8x20xf32>
    %211 = arith.addf %206, %210 : vector<8x20xf32>
    %c32 = arith.constant 32 : index
    %c0_37 = arith.constant 0 : index
    %212 = vector.load %arg1[%c32, %c0_37] : memref<96x20xf32, #tpu.memory_space<vmem>>, vector<1x20xf32>
    %213 = vector.broadcast %154 : vector<8x1xf32> to vector<8x20xf32>
    %214 = vector.broadcast %212 : vector<1x20xf32> to vector<8x20xf32>
    %215 = arith.mulf %213, %214 : vector<8x20xf32>
    %216 = arith.addf %211, %215 : vector<8x20xf32>
    %c33 = arith.constant 33 : index
    %c0_38 = arith.constant 0 : index
    %217 = vector.load %arg1[%c33, %c0_38] : memref<96x20xf32, #tpu.memory_space<vmem>>, vector<1x20xf32>
    %218 = vector.broadcast %155 : vector<8x1xf32> to vector<8x20xf32>
    %219 = vector.broadcast %217 : vector<1x20xf32> to vector<8x20xf32>
    %220 = arith.mulf %218, %219 : vector<8x20xf32>
    %221 = arith.addf %216, %220 : vector<8x20xf32>
    %c34 = arith.constant 34 : index
    %c0_39 = arith.constant 0 : index
    %222 = vector.load %arg1[%c34, %c0_39] : memref<96x20xf32, #tpu.memory_space<vmem>>, vector<1x20xf32>
    %223 = vector.broadcast %156 : vector<8x1xf32> to vector<8x20xf32>
    %224 = vector.broadcast %222 : vector<1x20xf32> to vector<8x20xf32>
    %225 = arith.mulf %223, %224 : vector<8x20xf32>
    %226 = arith.addf %221, %225 : vector<8x20xf32>
    %c35 = arith.constant 35 : index
    %c0_40 = arith.constant 0 : index
    %227 = vector.load %arg1[%c35, %c0_40] : memref<96x20xf32, #tpu.memory_space<vmem>>, vector<1x20xf32>
    %228 = vector.broadcast %157 : vector<8x1xf32> to vector<8x20xf32>
    %229 = vector.broadcast %227 : vector<1x20xf32> to vector<8x20xf32>
    %230 = arith.mulf %228, %229 : vector<8x20xf32>
    %231 = arith.addf %226, %230 : vector<8x20xf32>
    %c36 = arith.constant 36 : index
    %c0_41 = arith.constant 0 : index
    %232 = vector.load %arg1[%c36, %c0_41] : memref<96x20xf32, #tpu.memory_space<vmem>>, vector<1x20xf32>
    %233 = vector.broadcast %158 : vector<8x1xf32> to vector<8x20xf32>
    %234 = vector.broadcast %232 : vector<1x20xf32> to vector<8x20xf32>
    %235 = arith.mulf %233, %234 : vector<8x20xf32>
    %236 = arith.addf %231, %235 : vector<8x20xf32>
    %c37 = arith.constant 37 : index
    %c0_42 = arith.constant 0 : index
    %237 = vector.load %arg1[%c37, %c0_42] : memref<96x20xf32, #tpu.memory_space<vmem>>, vector<1x20xf32>
    %238 = vector.broadcast %159 : vector<8x1xf32> to vector<8x20xf32>
    %239 = vector.broadcast %237 : vector<1x20xf32> to vector<8x20xf32>
    %240 = arith.mulf %238, %239 : vector<8x20xf32>
    %241 = arith.addf %236, %240 : vector<8x20xf32>
    %c38 = arith.constant 38 : index
    %c0_43 = arith.constant 0 : index
    %242 = vector.load %arg1[%c38, %c0_43] : memref<96x20xf32, #tpu.memory_space<vmem>>, vector<1x20xf32>
    %243 = vector.broadcast %160 : vector<8x1xf32> to vector<8x20xf32>
    %244 = vector.broadcast %242 : vector<1x20xf32> to vector<8x20xf32>
    %245 = arith.mulf %243, %244 : vector<8x20xf32>
    %246 = arith.addf %241, %245 : vector<8x20xf32>
    %c39 = arith.constant 39 : index
    %c0_44 = arith.constant 0 : index
    %247 = vector.load %arg1[%c39, %c0_44] : memref<96x20xf32, #tpu.memory_space<vmem>>, vector<1x20xf32>
    %248 = vector.broadcast %161 : vector<8x1xf32> to vector<8x20xf32>
    %249 = vector.broadcast %247 : vector<1x20xf32> to vector<8x20xf32>
    %250 = arith.mulf %248, %249 : vector<8x20xf32>
    %251 = arith.addf %246, %250 : vector<8x20xf32>
    %c40 = arith.constant 40 : index
    %c0_45 = arith.constant 0 : index
    %252 = vector.load %arg1[%c40, %c0_45] : memref<96x20xf32, #tpu.memory_space<vmem>>, vector<1x20xf32>
    %253 = vector.broadcast %162 : vector<8x1xf32> to vector<8x20xf32>
    %254 = vector.broadcast %252 : vector<1x20xf32> to vector<8x20xf32>
    %255 = arith.mulf %253, %254 : vector<8x20xf32>
    %256 = arith.addf %251, %255 : vector<8x20xf32>
    %c41 = arith.constant 41 : index
    %c0_46 = arith.constant 0 : index
    %257 = vector.load %arg1[%c41, %c0_46] : memref<96x20xf32, #tpu.memory_space<vmem>>, vector<1x20xf32>
    %258 = vector.broadcast %163 : vector<8x1xf32> to vector<8x20xf32>
    %259 = vector.broadcast %257 : vector<1x20xf32> to vector<8x20xf32>
    %260 = arith.mulf %258, %259 : vector<8x20xf32>
    %261 = arith.addf %256, %260 : vector<8x20xf32>
    %c42 = arith.constant 42 : index
    %c0_47 = arith.constant 0 : index
    %262 = vector.load %arg1[%c42, %c0_47] : memref<96x20xf32, #tpu.memory_space<vmem>>, vector<1x20xf32>
    %263 = vector.broadcast %164 : vector<8x1xf32> to vector<8x20xf32>
    %264 = vector.broadcast %262 : vector<1x20xf32> to vector<8x20xf32>
    %265 = arith.mulf %263, %264 : vector<8x20xf32>
    %266 = arith.addf %261, %265 : vector<8x20xf32>
    %267 = vector.extract_strided_slice %266 {offsets = [0, 0], sizes = [8, 1], strides = [1, 1]} : vector<8x20xf32> to vector<8x1xf32>
    %268 = vector.extract_strided_slice %266 {offsets = [0, 1], sizes = [8, 1], strides = [1, 1]} : vector<8x20xf32> to vector<8x1xf32>
    %269 = vector.extract_strided_slice %266 {offsets = [0, 2], sizes = [8, 1], strides = [1, 1]} : vector<8x20xf32> to vector<8x1xf32>
    %c89 = arith.constant 89 : index
    %c0_48 = arith.constant 0 : index
    %270 = vector.load %arg1[%c89, %c0_48] : memref<96x20xf32, #tpu.memory_space<vmem>>, vector<1x20xf32>
    %c43 = arith.constant 43 : index
    %c0_49 = arith.constant 0 : index
    %271 = vector.load %arg1[%c43, %c0_49] : memref<96x20xf32, #tpu.memory_space<vmem>>, vector<1x20xf32>
    %272 = vector.broadcast %267 : vector<8x1xf32> to vector<8x20xf32>
    %273 = vector.broadcast %271 : vector<1x20xf32> to vector<8x20xf32>
    %274 = arith.mulf %272, %273 : vector<8x20xf32>
    %275 = vector.broadcast %270 : vector<1x20xf32> to vector<8x20xf32>
    %276 = arith.addf %275, %274 : vector<8x20xf32>
    %c44 = arith.constant 44 : index
    %c0_50 = arith.constant 0 : index
    %277 = vector.load %arg1[%c44, %c0_50] : memref<96x20xf32, #tpu.memory_space<vmem>>, vector<1x20xf32>
    %278 = vector.broadcast %268 : vector<8x1xf32> to vector<8x20xf32>
    %279 = vector.broadcast %277 : vector<1x20xf32> to vector<8x20xf32>
    %280 = arith.mulf %278, %279 : vector<8x20xf32>
    %281 = arith.addf %276, %280 : vector<8x20xf32>
    %c45 = arith.constant 45 : index
    %c0_51 = arith.constant 0 : index
    %282 = vector.load %arg1[%c45, %c0_51] : memref<96x20xf32, #tpu.memory_space<vmem>>, vector<1x20xf32>
    %283 = vector.broadcast %269 : vector<8x1xf32> to vector<8x20xf32>
    %284 = vector.broadcast %282 : vector<1x20xf32> to vector<8x20xf32>
    %285 = arith.mulf %283, %284 : vector<8x20xf32>
    %286 = arith.addf %281, %285 : vector<8x20xf32>
    %287 = math.tanh %286 : vector<8x20xf32>
    %288 = vector.extract_strided_slice %287 {offsets = [0, 0], sizes = [8, 1], strides = [1, 1]} : vector<8x20xf32> to vector<8x1xf32>
    %289 = vector.extract_strided_slice %287 {offsets = [0, 1], sizes = [8, 1], strides = [1, 1]} : vector<8x20xf32> to vector<8x1xf32>
    %290 = vector.extract_strided_slice %287 {offsets = [0, 2], sizes = [8, 1], strides = [1, 1]} : vector<8x20xf32> to vector<8x1xf32>
    %291 = vector.extract_strided_slice %287 {offsets = [0, 3], sizes = [8, 1], strides = [1, 1]} : vector<8x20xf32> to vector<8x1xf32>
    %292 = vector.extract_strided_slice %287 {offsets = [0, 4], sizes = [8, 1], strides = [1, 1]} : vector<8x20xf32> to vector<8x1xf32>
    %293 = vector.extract_strided_slice %287 {offsets = [0, 5], sizes = [8, 1], strides = [1, 1]} : vector<8x20xf32> to vector<8x1xf32>
    %294 = vector.extract_strided_slice %287 {offsets = [0, 6], sizes = [8, 1], strides = [1, 1]} : vector<8x20xf32> to vector<8x1xf32>
    %295 = vector.extract_strided_slice %287 {offsets = [0, 7], sizes = [8, 1], strides = [1, 1]} : vector<8x20xf32> to vector<8x1xf32>
    %296 = vector.extract_strided_slice %287 {offsets = [0, 8], sizes = [8, 1], strides = [1, 1]} : vector<8x20xf32> to vector<8x1xf32>
    %297 = vector.extract_strided_slice %287 {offsets = [0, 9], sizes = [8, 1], strides = [1, 1]} : vector<8x20xf32> to vector<8x1xf32>
    %298 = vector.extract_strided_slice %287 {offsets = [0, 10], sizes = [8, 1], strides = [1, 1]} : vector<8x20xf32> to vector<8x1xf32>
    %299 = vector.extract_strided_slice %287 {offsets = [0, 11], sizes = [8, 1], strides = [1, 1]} : vector<8x20xf32> to vector<8x1xf32>
    %300 = vector.extract_strided_slice %287 {offsets = [0, 12], sizes = [8, 1], strides = [1, 1]} : vector<8x20xf32> to vector<8x1xf32>
    %301 = vector.extract_strided_slice %287 {offsets = [0, 13], sizes = [8, 1], strides = [1, 1]} : vector<8x20xf32> to vector<8x1xf32>
    %302 = vector.extract_strided_slice %287 {offsets = [0, 14], sizes = [8, 1], strides = [1, 1]} : vector<8x20xf32> to vector<8x1xf32>
    %303 = vector.extract_strided_slice %287 {offsets = [0, 15], sizes = [8, 1], strides = [1, 1]} : vector<8x20xf32> to vector<8x1xf32>
    %304 = vector.extract_strided_slice %287 {offsets = [0, 16], sizes = [8, 1], strides = [1, 1]} : vector<8x20xf32> to vector<8x1xf32>
    %305 = vector.extract_strided_slice %287 {offsets = [0, 17], sizes = [8, 1], strides = [1, 1]} : vector<8x20xf32> to vector<8x1xf32>
    %306 = vector.extract_strided_slice %287 {offsets = [0, 18], sizes = [8, 1], strides = [1, 1]} : vector<8x20xf32> to vector<8x1xf32>
    %307 = vector.extract_strided_slice %287 {offsets = [0, 19], sizes = [8, 1], strides = [1, 1]} : vector<8x20xf32> to vector<8x1xf32>
    %c90 = arith.constant 90 : index
    %c0_52 = arith.constant 0 : index
    %308 = vector.load %arg1[%c90, %c0_52] : memref<96x20xf32, #tpu.memory_space<vmem>>, vector<1x20xf32>
    %c46 = arith.constant 46 : index
    %c0_53 = arith.constant 0 : index
    %309 = vector.load %arg1[%c46, %c0_53] : memref<96x20xf32, #tpu.memory_space<vmem>>, vector<1x20xf32>
    %310 = vector.broadcast %288 : vector<8x1xf32> to vector<8x20xf32>
    %311 = vector.broadcast %309 : vector<1x20xf32> to vector<8x20xf32>
    %312 = arith.mulf %310, %311 : vector<8x20xf32>
    %313 = vector.broadcast %308 : vector<1x20xf32> to vector<8x20xf32>
    %314 = arith.addf %313, %312 : vector<8x20xf32>
    %c47 = arith.constant 47 : index
    %c0_54 = arith.constant 0 : index
    %315 = vector.load %arg1[%c47, %c0_54] : memref<96x20xf32, #tpu.memory_space<vmem>>, vector<1x20xf32>
    %316 = vector.broadcast %289 : vector<8x1xf32> to vector<8x20xf32>
    %317 = vector.broadcast %315 : vector<1x20xf32> to vector<8x20xf32>
    %318 = arith.mulf %316, %317 : vector<8x20xf32>
    %319 = arith.addf %314, %318 : vector<8x20xf32>
    %c48 = arith.constant 48 : index
    %c0_55 = arith.constant 0 : index
    %320 = vector.load %arg1[%c48, %c0_55] : memref<96x20xf32, #tpu.memory_space<vmem>>, vector<1x20xf32>
    %321 = vector.broadcast %290 : vector<8x1xf32> to vector<8x20xf32>
    %322 = vector.broadcast %320 : vector<1x20xf32> to vector<8x20xf32>
    %323 = arith.mulf %321, %322 : vector<8x20xf32>
    %324 = arith.addf %319, %323 : vector<8x20xf32>
    %c49 = arith.constant 49 : index
    %c0_56 = arith.constant 0 : index
    %325 = vector.load %arg1[%c49, %c0_56] : memref<96x20xf32, #tpu.memory_space<vmem>>, vector<1x20xf32>
    %326 = vector.broadcast %291 : vector<8x1xf32> to vector<8x20xf32>
    %327 = vector.broadcast %325 : vector<1x20xf32> to vector<8x20xf32>
    %328 = arith.mulf %326, %327 : vector<8x20xf32>
    %329 = arith.addf %324, %328 : vector<8x20xf32>
    %c50 = arith.constant 50 : index
    %c0_57 = arith.constant 0 : index
    %330 = vector.load %arg1[%c50, %c0_57] : memref<96x20xf32, #tpu.memory_space<vmem>>, vector<1x20xf32>
    %331 = vector.broadcast %292 : vector<8x1xf32> to vector<8x20xf32>
    %332 = vector.broadcast %330 : vector<1x20xf32> to vector<8x20xf32>
    %333 = arith.mulf %331, %332 : vector<8x20xf32>
    %334 = arith.addf %329, %333 : vector<8x20xf32>
    %c51 = arith.constant 51 : index
    %c0_58 = arith.constant 0 : index
    %335 = vector.load %arg1[%c51, %c0_58] : memref<96x20xf32, #tpu.memory_space<vmem>>, vector<1x20xf32>
    %336 = vector.broadcast %293 : vector<8x1xf32> to vector<8x20xf32>
    %337 = vector.broadcast %335 : vector<1x20xf32> to vector<8x20xf32>
    %338 = arith.mulf %336, %337 : vector<8x20xf32>
    %339 = arith.addf %334, %338 : vector<8x20xf32>
    %c52 = arith.constant 52 : index
    %c0_59 = arith.constant 0 : index
    %340 = vector.load %arg1[%c52, %c0_59] : memref<96x20xf32, #tpu.memory_space<vmem>>, vector<1x20xf32>
    %341 = vector.broadcast %294 : vector<8x1xf32> to vector<8x20xf32>
    %342 = vector.broadcast %340 : vector<1x20xf32> to vector<8x20xf32>
    %343 = arith.mulf %341, %342 : vector<8x20xf32>
    %344 = arith.addf %339, %343 : vector<8x20xf32>
    %c53 = arith.constant 53 : index
    %c0_60 = arith.constant 0 : index
    %345 = vector.load %arg1[%c53, %c0_60] : memref<96x20xf32, #tpu.memory_space<vmem>>, vector<1x20xf32>
    %346 = vector.broadcast %295 : vector<8x1xf32> to vector<8x20xf32>
    %347 = vector.broadcast %345 : vector<1x20xf32> to vector<8x20xf32>
    %348 = arith.mulf %346, %347 : vector<8x20xf32>
    %349 = arith.addf %344, %348 : vector<8x20xf32>
    %c54 = arith.constant 54 : index
    %c0_61 = arith.constant 0 : index
    %350 = vector.load %arg1[%c54, %c0_61] : memref<96x20xf32, #tpu.memory_space<vmem>>, vector<1x20xf32>
    %351 = vector.broadcast %296 : vector<8x1xf32> to vector<8x20xf32>
    %352 = vector.broadcast %350 : vector<1x20xf32> to vector<8x20xf32>
    %353 = arith.mulf %351, %352 : vector<8x20xf32>
    %354 = arith.addf %349, %353 : vector<8x20xf32>
    %c55 = arith.constant 55 : index
    %c0_62 = arith.constant 0 : index
    %355 = vector.load %arg1[%c55, %c0_62] : memref<96x20xf32, #tpu.memory_space<vmem>>, vector<1x20xf32>
    %356 = vector.broadcast %297 : vector<8x1xf32> to vector<8x20xf32>
    %357 = vector.broadcast %355 : vector<1x20xf32> to vector<8x20xf32>
    %358 = arith.mulf %356, %357 : vector<8x20xf32>
    %359 = arith.addf %354, %358 : vector<8x20xf32>
    %c56 = arith.constant 56 : index
    %c0_63 = arith.constant 0 : index
    %360 = vector.load %arg1[%c56, %c0_63] : memref<96x20xf32, #tpu.memory_space<vmem>>, vector<1x20xf32>
    %361 = vector.broadcast %298 : vector<8x1xf32> to vector<8x20xf32>
    %362 = vector.broadcast %360 : vector<1x20xf32> to vector<8x20xf32>
    %363 = arith.mulf %361, %362 : vector<8x20xf32>
    %364 = arith.addf %359, %363 : vector<8x20xf32>
    %c57 = arith.constant 57 : index
    %c0_64 = arith.constant 0 : index
    %365 = vector.load %arg1[%c57, %c0_64] : memref<96x20xf32, #tpu.memory_space<vmem>>, vector<1x20xf32>
    %366 = vector.broadcast %299 : vector<8x1xf32> to vector<8x20xf32>
    %367 = vector.broadcast %365 : vector<1x20xf32> to vector<8x20xf32>
    %368 = arith.mulf %366, %367 : vector<8x20xf32>
    %369 = arith.addf %364, %368 : vector<8x20xf32>
    %c58 = arith.constant 58 : index
    %c0_65 = arith.constant 0 : index
    %370 = vector.load %arg1[%c58, %c0_65] : memref<96x20xf32, #tpu.memory_space<vmem>>, vector<1x20xf32>
    %371 = vector.broadcast %300 : vector<8x1xf32> to vector<8x20xf32>
    %372 = vector.broadcast %370 : vector<1x20xf32> to vector<8x20xf32>
    %373 = arith.mulf %371, %372 : vector<8x20xf32>
    %374 = arith.addf %369, %373 : vector<8x20xf32>
    %c59 = arith.constant 59 : index
    %c0_66 = arith.constant 0 : index
    %375 = vector.load %arg1[%c59, %c0_66] : memref<96x20xf32, #tpu.memory_space<vmem>>, vector<1x20xf32>
    %376 = vector.broadcast %301 : vector<8x1xf32> to vector<8x20xf32>
    %377 = vector.broadcast %375 : vector<1x20xf32> to vector<8x20xf32>
    %378 = arith.mulf %376, %377 : vector<8x20xf32>
    %379 = arith.addf %374, %378 : vector<8x20xf32>
    %c60 = arith.constant 60 : index
    %c0_67 = arith.constant 0 : index
    %380 = vector.load %arg1[%c60, %c0_67] : memref<96x20xf32, #tpu.memory_space<vmem>>, vector<1x20xf32>
    %381 = vector.broadcast %302 : vector<8x1xf32> to vector<8x20xf32>
    %382 = vector.broadcast %380 : vector<1x20xf32> to vector<8x20xf32>
    %383 = arith.mulf %381, %382 : vector<8x20xf32>
    %384 = arith.addf %379, %383 : vector<8x20xf32>
    %c61 = arith.constant 61 : index
    %c0_68 = arith.constant 0 : index
    %385 = vector.load %arg1[%c61, %c0_68] : memref<96x20xf32, #tpu.memory_space<vmem>>, vector<1x20xf32>
    %386 = vector.broadcast %303 : vector<8x1xf32> to vector<8x20xf32>
    %387 = vector.broadcast %385 : vector<1x20xf32> to vector<8x20xf32>
    %388 = arith.mulf %386, %387 : vector<8x20xf32>
    %389 = arith.addf %384, %388 : vector<8x20xf32>
    %c62 = arith.constant 62 : index
    %c0_69 = arith.constant 0 : index
    %390 = vector.load %arg1[%c62, %c0_69] : memref<96x20xf32, #tpu.memory_space<vmem>>, vector<1x20xf32>
    %391 = vector.broadcast %304 : vector<8x1xf32> to vector<8x20xf32>
    %392 = vector.broadcast %390 : vector<1x20xf32> to vector<8x20xf32>
    %393 = arith.mulf %391, %392 : vector<8x20xf32>
    %394 = arith.addf %389, %393 : vector<8x20xf32>
    %c63 = arith.constant 63 : index
    %c0_70 = arith.constant 0 : index
    %395 = vector.load %arg1[%c63, %c0_70] : memref<96x20xf32, #tpu.memory_space<vmem>>, vector<1x20xf32>
    %396 = vector.broadcast %305 : vector<8x1xf32> to vector<8x20xf32>
    %397 = vector.broadcast %395 : vector<1x20xf32> to vector<8x20xf32>
    %398 = arith.mulf %396, %397 : vector<8x20xf32>
    %399 = arith.addf %394, %398 : vector<8x20xf32>
    %c64 = arith.constant 64 : index
    %c0_71 = arith.constant 0 : index
    %400 = vector.load %arg1[%c64, %c0_71] : memref<96x20xf32, #tpu.memory_space<vmem>>, vector<1x20xf32>
    %401 = vector.broadcast %306 : vector<8x1xf32> to vector<8x20xf32>
    %402 = vector.broadcast %400 : vector<1x20xf32> to vector<8x20xf32>
    %403 = arith.mulf %401, %402 : vector<8x20xf32>
    %404 = arith.addf %399, %403 : vector<8x20xf32>
    %c65 = arith.constant 65 : index
    %c0_72 = arith.constant 0 : index
    %405 = vector.load %arg1[%c65, %c0_72] : memref<96x20xf32, #tpu.memory_space<vmem>>, vector<1x20xf32>
    %406 = vector.broadcast %307 : vector<8x1xf32> to vector<8x20xf32>
    %407 = vector.broadcast %405 : vector<1x20xf32> to vector<8x20xf32>
    %408 = arith.mulf %406, %407 : vector<8x20xf32>
    %409 = arith.addf %404, %408 : vector<8x20xf32>
    %410 = math.tanh %409 : vector<8x20xf32>
    %411 = vector.extract_strided_slice %410 {offsets = [0, 0], sizes = [8, 1], strides = [1, 1]} : vector<8x20xf32> to vector<8x1xf32>
    %412 = vector.extract_strided_slice %410 {offsets = [0, 1], sizes = [8, 1], strides = [1, 1]} : vector<8x20xf32> to vector<8x1xf32>
    %413 = vector.extract_strided_slice %410 {offsets = [0, 2], sizes = [8, 1], strides = [1, 1]} : vector<8x20xf32> to vector<8x1xf32>
    %414 = vector.extract_strided_slice %410 {offsets = [0, 3], sizes = [8, 1], strides = [1, 1]} : vector<8x20xf32> to vector<8x1xf32>
    %415 = vector.extract_strided_slice %410 {offsets = [0, 4], sizes = [8, 1], strides = [1, 1]} : vector<8x20xf32> to vector<8x1xf32>
    %416 = vector.extract_strided_slice %410 {offsets = [0, 5], sizes = [8, 1], strides = [1, 1]} : vector<8x20xf32> to vector<8x1xf32>
    %417 = vector.extract_strided_slice %410 {offsets = [0, 6], sizes = [8, 1], strides = [1, 1]} : vector<8x20xf32> to vector<8x1xf32>
    %418 = vector.extract_strided_slice %410 {offsets = [0, 7], sizes = [8, 1], strides = [1, 1]} : vector<8x20xf32> to vector<8x1xf32>
    %419 = vector.extract_strided_slice %410 {offsets = [0, 8], sizes = [8, 1], strides = [1, 1]} : vector<8x20xf32> to vector<8x1xf32>
    %420 = vector.extract_strided_slice %410 {offsets = [0, 9], sizes = [8, 1], strides = [1, 1]} : vector<8x20xf32> to vector<8x1xf32>
    %421 = vector.extract_strided_slice %410 {offsets = [0, 10], sizes = [8, 1], strides = [1, 1]} : vector<8x20xf32> to vector<8x1xf32>
    %422 = vector.extract_strided_slice %410 {offsets = [0, 11], sizes = [8, 1], strides = [1, 1]} : vector<8x20xf32> to vector<8x1xf32>
    %423 = vector.extract_strided_slice %410 {offsets = [0, 12], sizes = [8, 1], strides = [1, 1]} : vector<8x20xf32> to vector<8x1xf32>
    %424 = vector.extract_strided_slice %410 {offsets = [0, 13], sizes = [8, 1], strides = [1, 1]} : vector<8x20xf32> to vector<8x1xf32>
    %425 = vector.extract_strided_slice %410 {offsets = [0, 14], sizes = [8, 1], strides = [1, 1]} : vector<8x20xf32> to vector<8x1xf32>
    %426 = vector.extract_strided_slice %410 {offsets = [0, 15], sizes = [8, 1], strides = [1, 1]} : vector<8x20xf32> to vector<8x1xf32>
    %427 = vector.extract_strided_slice %410 {offsets = [0, 16], sizes = [8, 1], strides = [1, 1]} : vector<8x20xf32> to vector<8x1xf32>
    %428 = vector.extract_strided_slice %410 {offsets = [0, 17], sizes = [8, 1], strides = [1, 1]} : vector<8x20xf32> to vector<8x1xf32>
    %429 = vector.extract_strided_slice %410 {offsets = [0, 18], sizes = [8, 1], strides = [1, 1]} : vector<8x20xf32> to vector<8x1xf32>
    %430 = vector.extract_strided_slice %410 {offsets = [0, 19], sizes = [8, 1], strides = [1, 1]} : vector<8x20xf32> to vector<8x1xf32>
    %c91 = arith.constant 91 : index
    %c0_73 = arith.constant 0 : index
    %431 = vector.load %arg1[%c91, %c0_73] : memref<96x20xf32, #tpu.memory_space<vmem>>, vector<1x20xf32>
    %c66 = arith.constant 66 : index
    %c0_74 = arith.constant 0 : index
    %432 = vector.load %arg1[%c66, %c0_74] : memref<96x20xf32, #tpu.memory_space<vmem>>, vector<1x20xf32>
    %433 = vector.broadcast %411 : vector<8x1xf32> to vector<8x20xf32>
    %434 = vector.broadcast %432 : vector<1x20xf32> to vector<8x20xf32>
    %435 = arith.mulf %433, %434 : vector<8x20xf32>
    %436 = vector.broadcast %431 : vector<1x20xf32> to vector<8x20xf32>
    %437 = arith.addf %436, %435 : vector<8x20xf32>
    %c67 = arith.constant 67 : index
    %c0_75 = arith.constant 0 : index
    %438 = vector.load %arg1[%c67, %c0_75] : memref<96x20xf32, #tpu.memory_space<vmem>>, vector<1x20xf32>
    %439 = vector.broadcast %412 : vector<8x1xf32> to vector<8x20xf32>
    %440 = vector.broadcast %438 : vector<1x20xf32> to vector<8x20xf32>
    %441 = arith.mulf %439, %440 : vector<8x20xf32>
    %442 = arith.addf %437, %441 : vector<8x20xf32>
    %c68 = arith.constant 68 : index
    %c0_76 = arith.constant 0 : index
    %443 = vector.load %arg1[%c68, %c0_76] : memref<96x20xf32, #tpu.memory_space<vmem>>, vector<1x20xf32>
    %444 = vector.broadcast %413 : vector<8x1xf32> to vector<8x20xf32>
    %445 = vector.broadcast %443 : vector<1x20xf32> to vector<8x20xf32>
    %446 = arith.mulf %444, %445 : vector<8x20xf32>
    %447 = arith.addf %442, %446 : vector<8x20xf32>
    %c69 = arith.constant 69 : index
    %c0_77 = arith.constant 0 : index
    %448 = vector.load %arg1[%c69, %c0_77] : memref<96x20xf32, #tpu.memory_space<vmem>>, vector<1x20xf32>
    %449 = vector.broadcast %414 : vector<8x1xf32> to vector<8x20xf32>
    %450 = vector.broadcast %448 : vector<1x20xf32> to vector<8x20xf32>
    %451 = arith.mulf %449, %450 : vector<8x20xf32>
    %452 = arith.addf %447, %451 : vector<8x20xf32>
    %c70 = arith.constant 70 : index
    %c0_78 = arith.constant 0 : index
    %453 = vector.load %arg1[%c70, %c0_78] : memref<96x20xf32, #tpu.memory_space<vmem>>, vector<1x20xf32>
    %454 = vector.broadcast %415 : vector<8x1xf32> to vector<8x20xf32>
    %455 = vector.broadcast %453 : vector<1x20xf32> to vector<8x20xf32>
    %456 = arith.mulf %454, %455 : vector<8x20xf32>
    %457 = arith.addf %452, %456 : vector<8x20xf32>
    %c71 = arith.constant 71 : index
    %c0_79 = arith.constant 0 : index
    %458 = vector.load %arg1[%c71, %c0_79] : memref<96x20xf32, #tpu.memory_space<vmem>>, vector<1x20xf32>
    %459 = vector.broadcast %416 : vector<8x1xf32> to vector<8x20xf32>
    %460 = vector.broadcast %458 : vector<1x20xf32> to vector<8x20xf32>
    %461 = arith.mulf %459, %460 : vector<8x20xf32>
    %462 = arith.addf %457, %461 : vector<8x20xf32>
    %c72 = arith.constant 72 : index
    %c0_80 = arith.constant 0 : index
    %463 = vector.load %arg1[%c72, %c0_80] : memref<96x20xf32, #tpu.memory_space<vmem>>, vector<1x20xf32>
    %464 = vector.broadcast %417 : vector<8x1xf32> to vector<8x20xf32>
    %465 = vector.broadcast %463 : vector<1x20xf32> to vector<8x20xf32>
    %466 = arith.mulf %464, %465 : vector<8x20xf32>
    %467 = arith.addf %462, %466 : vector<8x20xf32>
    %c73 = arith.constant 73 : index
    %c0_81 = arith.constant 0 : index
    %468 = vector.load %arg1[%c73, %c0_81] : memref<96x20xf32, #tpu.memory_space<vmem>>, vector<1x20xf32>
    %469 = vector.broadcast %418 : vector<8x1xf32> to vector<8x20xf32>
    %470 = vector.broadcast %468 : vector<1x20xf32> to vector<8x20xf32>
    %471 = arith.mulf %469, %470 : vector<8x20xf32>
    %472 = arith.addf %467, %471 : vector<8x20xf32>
    %c74 = arith.constant 74 : index
    %c0_82 = arith.constant 0 : index
    %473 = vector.load %arg1[%c74, %c0_82] : memref<96x20xf32, #tpu.memory_space<vmem>>, vector<1x20xf32>
    %474 = vector.broadcast %419 : vector<8x1xf32> to vector<8x20xf32>
    %475 = vector.broadcast %473 : vector<1x20xf32> to vector<8x20xf32>
    %476 = arith.mulf %474, %475 : vector<8x20xf32>
    %477 = arith.addf %472, %476 : vector<8x20xf32>
    %c75 = arith.constant 75 : index
    %c0_83 = arith.constant 0 : index
    %478 = vector.load %arg1[%c75, %c0_83] : memref<96x20xf32, #tpu.memory_space<vmem>>, vector<1x20xf32>
    %479 = vector.broadcast %420 : vector<8x1xf32> to vector<8x20xf32>
    %480 = vector.broadcast %478 : vector<1x20xf32> to vector<8x20xf32>
    %481 = arith.mulf %479, %480 : vector<8x20xf32>
    %482 = arith.addf %477, %481 : vector<8x20xf32>
    %c76 = arith.constant 76 : index
    %c0_84 = arith.constant 0 : index
    %483 = vector.load %arg1[%c76, %c0_84] : memref<96x20xf32, #tpu.memory_space<vmem>>, vector<1x20xf32>
    %484 = vector.broadcast %421 : vector<8x1xf32> to vector<8x20xf32>
    %485 = vector.broadcast %483 : vector<1x20xf32> to vector<8x20xf32>
    %486 = arith.mulf %484, %485 : vector<8x20xf32>
    %487 = arith.addf %482, %486 : vector<8x20xf32>
    %c77 = arith.constant 77 : index
    %c0_85 = arith.constant 0 : index
    %488 = vector.load %arg1[%c77, %c0_85] : memref<96x20xf32, #tpu.memory_space<vmem>>, vector<1x20xf32>
    %489 = vector.broadcast %422 : vector<8x1xf32> to vector<8x20xf32>
    %490 = vector.broadcast %488 : vector<1x20xf32> to vector<8x20xf32>
    %491 = arith.mulf %489, %490 : vector<8x20xf32>
    %492 = arith.addf %487, %491 : vector<8x20xf32>
    %c78 = arith.constant 78 : index
    %c0_86 = arith.constant 0 : index
    %493 = vector.load %arg1[%c78, %c0_86] : memref<96x20xf32, #tpu.memory_space<vmem>>, vector<1x20xf32>
    %494 = vector.broadcast %423 : vector<8x1xf32> to vector<8x20xf32>
    %495 = vector.broadcast %493 : vector<1x20xf32> to vector<8x20xf32>
    %496 = arith.mulf %494, %495 : vector<8x20xf32>
    %497 = arith.addf %492, %496 : vector<8x20xf32>
    %c79 = arith.constant 79 : index
    %c0_87 = arith.constant 0 : index
    %498 = vector.load %arg1[%c79, %c0_87] : memref<96x20xf32, #tpu.memory_space<vmem>>, vector<1x20xf32>
    %499 = vector.broadcast %424 : vector<8x1xf32> to vector<8x20xf32>
    %500 = vector.broadcast %498 : vector<1x20xf32> to vector<8x20xf32>
    %501 = arith.mulf %499, %500 : vector<8x20xf32>
    %502 = arith.addf %497, %501 : vector<8x20xf32>
    %c80 = arith.constant 80 : index
    %c0_88 = arith.constant 0 : index
    %503 = vector.load %arg1[%c80, %c0_88] : memref<96x20xf32, #tpu.memory_space<vmem>>, vector<1x20xf32>
    %504 = vector.broadcast %425 : vector<8x1xf32> to vector<8x20xf32>
    %505 = vector.broadcast %503 : vector<1x20xf32> to vector<8x20xf32>
    %506 = arith.mulf %504, %505 : vector<8x20xf32>
    %507 = arith.addf %502, %506 : vector<8x20xf32>
    %c81 = arith.constant 81 : index
    %c0_89 = arith.constant 0 : index
    %508 = vector.load %arg1[%c81, %c0_89] : memref<96x20xf32, #tpu.memory_space<vmem>>, vector<1x20xf32>
    %509 = vector.broadcast %426 : vector<8x1xf32> to vector<8x20xf32>
    %510 = vector.broadcast %508 : vector<1x20xf32> to vector<8x20xf32>
    %511 = arith.mulf %509, %510 : vector<8x20xf32>
    %512 = arith.addf %507, %511 : vector<8x20xf32>
    %c82 = arith.constant 82 : index
    %c0_90 = arith.constant 0 : index
    %513 = vector.load %arg1[%c82, %c0_90] : memref<96x20xf32, #tpu.memory_space<vmem>>, vector<1x20xf32>
    %514 = vector.broadcast %427 : vector<8x1xf32> to vector<8x20xf32>
    %515 = vector.broadcast %513 : vector<1x20xf32> to vector<8x20xf32>
    %516 = arith.mulf %514, %515 : vector<8x20xf32>
    %517 = arith.addf %512, %516 : vector<8x20xf32>
    %c83 = arith.constant 83 : index
    %c0_91 = arith.constant 0 : index
    %518 = vector.load %arg1[%c83, %c0_91] : memref<96x20xf32, #tpu.memory_space<vmem>>, vector<1x20xf32>
    %519 = vector.broadcast %428 : vector<8x1xf32> to vector<8x20xf32>
    %520 = vector.broadcast %518 : vector<1x20xf32> to vector<8x20xf32>
    %521 = arith.mulf %519, %520 : vector<8x20xf32>
    %522 = arith.addf %517, %521 : vector<8x20xf32>
    %c84 = arith.constant 84 : index
    %c0_92 = arith.constant 0 : index
    %523 = vector.load %arg1[%c84, %c0_92] : memref<96x20xf32, #tpu.memory_space<vmem>>, vector<1x20xf32>
    %524 = vector.broadcast %429 : vector<8x1xf32> to vector<8x20xf32>
    %525 = vector.broadcast %523 : vector<1x20xf32> to vector<8x20xf32>
    %526 = arith.mulf %524, %525 : vector<8x20xf32>
    %527 = arith.addf %522, %526 : vector<8x20xf32>
    %c85 = arith.constant 85 : index
    %c0_93 = arith.constant 0 : index
    %528 = vector.load %arg1[%c85, %c0_93] : memref<96x20xf32, #tpu.memory_space<vmem>>, vector<1x20xf32>
    %529 = vector.broadcast %430 : vector<8x1xf32> to vector<8x20xf32>
    %530 = vector.broadcast %528 : vector<1x20xf32> to vector<8x20xf32>
    %531 = arith.mulf %529, %530 : vector<8x20xf32>
    %532 = arith.addf %527, %531 : vector<8x20xf32>
    %533 = vector.extract_strided_slice %532 {offsets = [0, 0], sizes = [8, 3], strides = [1, 1]} : vector<8x20xf32> to vector<8x3xf32>
    %534 = arith.subf %533, %0 : vector<8x3xf32>
    %535 = arith.mulf %534, %534 : vector<8x3xf32>
    %536 = vector.shape_cast %535 : vector<8x3xf32> to vector<1x8x3xf32>
    %cst = arith.constant dense<0.000000e+00> : vector<1xf32>
    %537 = vector.multi_reduction <add>, %536, %cst [1, 2] : vector<1x8x3xf32> to vector<1xf32>
    %538 = vector.shape_cast %537 : vector<1xf32> to vector<1x1x1xf32>
    %539 = vector.extract %538[0, 0, 0] : f32 from vector<1x1x1xf32>
    %540 = vector.extract_strided_slice %266 {offsets = [0, 0], sizes = [1, 1], strides = [1, 1]} : vector<8x20xf32> to vector<1x1xf32>
    %541 = vector.shape_cast %540 : vector<1x1xf32> to vector<1x1x1xf32>
    %cst_94 = arith.constant dense<0.000000e+00> : vector<1xf32>
    %542 = vector.multi_reduction <add>, %541, %cst_94 [1, 2] : vector<1x1x1xf32> to vector<1xf32>
    %543 = vector.shape_cast %542 : vector<1xf32> to vector<1x1x1xf32>
    %544 = vector.extract %543[0, 0, 0] : f32 from vector<1x1x1xf32>
    %545 = vector.extract_strided_slice %266 {offsets = [0, 1], sizes = [1, 1], strides = [1, 1]} : vector<8x20xf32> to vector<1x1xf32>
    %546 = vector.shape_cast %545 : vector<1x1xf32> to vector<1x1x1xf32>
    %cst_95 = arith.constant dense<0.000000e+00> : vector<1xf32>
    %547 = vector.multi_reduction <add>, %546, %cst_95 [1, 2] : vector<1x1x1xf32> to vector<1xf32>
    %548 = vector.shape_cast %547 : vector<1xf32> to vector<1x1x1xf32>
    %549 = vector.extract %548[0, 0, 0] : f32 from vector<1x1x1xf32>
    %550 = vector.extract_strided_slice %266 {offsets = [0, 2], sizes = [1, 1], strides = [1, 1]} : vector<8x20xf32> to vector<1x1xf32>
    %551 = vector.shape_cast %550 : vector<1x1xf32> to vector<1x1x1xf32>
    %cst_96 = arith.constant dense<0.000000e+00> : vector<1xf32>
    %552 = vector.multi_reduction <add>, %551, %cst_96 [1, 2] : vector<1x1x1xf32> to vector<1xf32>
    %553 = vector.shape_cast %552 : vector<1xf32> to vector<1x1x1xf32>
    %554 = vector.extract %553[0, 0, 0] : f32 from vector<1x1x1xf32>
    %555 = tpu.iota {dimensions = array<i32: 1>} : vector<1x4xi32>
    %c0_i32 = arith.constant 0 : i32
    %556 = vector.broadcast %c0_i32 : i32 to vector<1x4xi32>
    %557 = arith.cmpi eq, %555, %556 : vector<1x4xi32>
    %cst_97 = arith.constant 0.000000e+00 : f32
    %558 = vector.broadcast %544 : f32 to vector<1x4xf32>
    %559 = vector.broadcast %cst_97 : f32 to vector<1x4xf32>
    %560 = arith.select %557, %558, %559 : vector<1x4xi1>, vector<1x4xf32>
    %c1_i32 = arith.constant 1 : i32
    %561 = vector.broadcast %c1_i32 : i32 to vector<1x4xi32>
    %562 = arith.cmpi eq, %555, %561 : vector<1x4xi32>
    %cst_98 = arith.constant 0.000000e+00 : f32
    %563 = vector.broadcast %549 : f32 to vector<1x4xf32>
    %564 = vector.broadcast %cst_98 : f32 to vector<1x4xf32>
    %565 = arith.select %562, %563, %564 : vector<1x4xi1>, vector<1x4xf32>
    %566 = arith.addf %560, %565 : vector<1x4xf32>
    %c2_i32 = arith.constant 2 : i32
    %567 = vector.broadcast %c2_i32 : i32 to vector<1x4xi32>
    %568 = arith.cmpi eq, %555, %567 : vector<1x4xi32>
    %cst_99 = arith.constant 0.000000e+00 : f32
    %569 = vector.broadcast %554 : f32 to vector<1x4xf32>
    %570 = vector.broadcast %cst_99 : f32 to vector<1x4xf32>
    %571 = arith.select %568, %569, %570 : vector<1x4xi1>, vector<1x4xf32>
    %572 = arith.addf %566, %571 : vector<1x4xf32>
    %c3_i32 = arith.constant 3 : i32
    %573 = vector.broadcast %c3_i32 : i32 to vector<1x4xi32>
    %574 = arith.cmpi eq, %555, %573 : vector<1x4xi32>
    %cst_100 = arith.constant 0.000000e+00 : f32
    %575 = vector.broadcast %539 : f32 to vector<1x4xf32>
    %576 = vector.broadcast %cst_100 : f32 to vector<1x4xf32>
    %577 = arith.select %574, %575, %576 : vector<1x4xi1>, vector<1x4xf32>
    %578 = arith.addf %572, %577 : vector<1x4xf32>
    %c0_101 = arith.constant 0 : index
    %c0_102 = arith.constant 0 : index
    %579 = vector.load %arg2[%c0_101, %c0_102] : memref<1x4xf32, #tpu.memory_space<vmem>>, vector<1x4xf32>
    tpu.vector_store %arg2[%c0_101, %c0_102], %578 {strides = array<i32>} : memref<1x4xf32, #tpu.memory_space<vmem>>, vector<1x4xf32>,
    return
  }
}

</mosaic_0001>

<llo_original>
// kernel: linearnet_forward.1
$region0: #{linearnet_forward.1}
  #allocation0 [shape = 'u32[]', space=smem, size = 0x4, offset = 0x4, fixed_abs, tag = 'smem constant byte address 0x4 - core index']
  #allocation1 [shape = 'u32[144,128]{1,0:T(1,128)}', space=vmem, size = 0x12000, scoped, tag = 'internal scratch']
  %s0 = inlined_call_operand.vmem [shape: f32[8,3], index: 0, kind: input, shape index: {}]
  %s1 = inlined_call_operand.vmem [shape: f32[96,20], index: 1, kind: input, shape index: {}]
  %s2 = inlined_call_operand.vmem [shape: f32[1,4], index: 2, kind: output, shape index: {}]
  %s3 = sld [smem:[#allocation0]]
  $region18: #{linearnet_forward.1} parent=0
    _
  %s5 = ssub.s32 1, %s3
  %s6 = scalar_select 0, %s5, %s3
  // Predicated region
  $region2: #{linearnet_forward.1} parent=0 // pred_check
    _
  $region3: #{linearnet_forward.1} parent=0 // pred_check_branch
    %8 = sbr.rel (0) target = $region5
  $region4: #{linearnet_forward.1} parent=0 // pred_region
    _
  $region5: #{linearnet_forward.1} parent=0 // pred_fallthru
    _
  // Predicated region
  $region6: #{linearnet_forward.1} parent=0 // pred_check
    _
  $region7: #{linearnet_forward.1} parent=0 // pred_check_branch
    %10 = sbr.rel (0) target = $region9
  $region8: #{linearnet_forward.1} parent=0 // pred_region
    _
  $region9: #{linearnet_forward.1} parent=0 // pred_fallthru
    _
  %v11 = vld [vmem:[%s0] sm:$0xff]
  %v12 = vld [vmem:[%s1 + $0x56] sm:$0x1]
  %v13 = vld [vmem:[%s1] sm:$0x1]
  %15 = vset.pattern.permute.xlu0 0
  %16 = vperm.xlu0 %15, %v11
  %v17 = vpop.permute.xlu0 %16
  %v19 = vlaneseq
  %v20 = vshrl.u32 %v19, 7
  %v21 = vsub.s32 0, %v20
  %v22 = vrot.slane %v13, %v21
  %v23 = vmul.f32 %v17, %v22
  %v24 = vlaneseq
  %v25 = vshrl.u32 %v24, 7
  %v26 = vsub.s32 0, %v25
  %v27 = vrot.slane %v12, %v26
  %v28 = vadd.f32 %v27, %v23
  %v29 = vld [vmem:[%s1 + $0x1] sm:$0x1]
  %30 = vset.pattern.permute.xlu0 1
  %31 = vperm.xlu0 %30, %v11
  %v32 = vpop.permute.xlu0 %31
  %v34 = vlaneseq
  %v35 = vshrl.u32 %v34, 7
  %v36 = vsub.s32 0, %v35
  %v37 = vrot.slane %v29, %v36
  %v38 = vmul.f32 %v32, %v37
  %v39 = vadd.f32 %v28, %v38
  %v40 = vld [vmem:[%s1 + $0x2] sm:$0x1]
  %41 = vset.pattern.permute.xlu0 2
  %42 = vperm.xlu0 %41, %v11
  %v43 = vpop.permute.xlu0 %42
  %v45 = vlaneseq
  %v46 = vshrl.u32 %v45, 7
  %v47 = vsub.s32 0, %v46
  %v48 = vrot.slane %v40, %v47
  %v49 = vmul.f32 %v43, %v48
  %v50 = vadd.f32 %v39, %v49
  %v51 = vtanh.pop %v50
  %v52 = vld [vmem:[%s1 + $0x57] sm:$0x1]
  %v53 = vld [vmem:[%s1 + $0x3] sm:$0x1]
  %55 = vset.pattern.permute.xlu0 0
  %56 = vperm.xlu0 %55, %v51
  %v57 = vpop.permute.xlu0 %56
  %v59 = vlaneseq
  %v60 = vshrl.u32 %v59, 7
  %v61 = vsub.s32 0, %v60
  %v62 = vrot.slane %v53, %v61
  %v63 = vmul.f32 %v57, %v62
  %v64 = vlaneseq
  %v65 = vshrl.u32 %v64, 7
  %v66 = vsub.s32 0, %v65
  %v67 = vrot.slane %v52, %v66
  %v68 = vadd.f32 %v67, %v63
  %v69 = vld [vmem:[%s1 + $0x4] sm:$0x1]
  %70 = vset.pattern.permute.xlu0 1
  %71 = vperm.xlu0 %70, %v51
  %v72 = vpop.permute.xlu0 %71
  %v74 = vlaneseq
  %v75 = vshrl.u32 %v74, 7
  %v76 = vsub.s32 0, %v75
  %v77 = vrot.slane %v69, %v76
  %v78 = vmul.f32 %v72, %v77
  %v79 = vadd.f32 %v68, %v78
  %v80 = vld [vmem:[%s1 + $0x5] sm:$0x1]
  %81 = vset.pattern.permute.xlu0 2
  %82 = vperm.xlu0 %81, %v51
  %v83 = vpop.permute.xlu0 %82
  %v85 = vlaneseq
  %v86 = vshrl.u32 %v85, 7
  %v87 = vsub.s32 0, %v86
  %v88 = vrot.slane %v80, %v87
  %v89 = vmul.f32 %v83, %v88
  %v90 = vadd.f32 %v79, %v89
  %v91 = vld [vmem:[%s1 + $0x6] sm:$0x1]
  %92 = vset.pattern.permute.xlu0 3
  %93 = vperm.xlu0 %92, %v51
  %v94 = vpop.permute.xlu0 %93
  %v96 = vlaneseq
  %v97 = vshrl.u32 %v96, 7
  %v98 = vsub.s32 0, %v97
  %v99 = vrot.slane %v91, %v98
  %v100 = vmul.f32 %v94, %v99
  %v101 = vadd.f32 %v90, %v100
  %v102 = vld [vmem:[%s1 + $0x7] sm:$0x1]
  %103 = vset.pattern.permute.xlu0 4
  %104 = vperm.xlu0 %103, %v51
  %v105 = vpop.permute.xlu0 %104
  %v107 = vlaneseq
  %v108 = vshrl.u32 %v107, 7
  %v109 = vsub.s32 0, %v108
  %v110 = vrot.slane %v102, %v109
  %v111 = vmul.f32 %v105, %v110
  %v112 = vadd.f32 %v101, %v111
  %v113 = vld [vmem:[%s1 + $0x8] sm:$0x1]
  %114 = vset.pattern.permute.xlu0 5
  %115 = vperm.xlu0 %114, %v51
  %v116 = vpop.permute.xlu0 %115
  %v118 = vlaneseq
  %v119 = vshrl.u32 %v118, 7
  %v120 = vsub.s32 0, %v119
  %v121 = vrot.slane %v113, %v120
  %v122 = vmul.f32 %v116, %v121
  %v123 = vadd.f32 %v112, %v122
  %v124 = vld [vmem:[%s1 + $0x9] sm:$0x1]
  %125 = vset.pattern.permute.xlu0 6
  %126 = vperm.xlu0 %125, %v51
  %v127 = vpop.permute.xlu0 %126
  %v129 = vlaneseq
  %v130 = vshrl.u32 %v129, 7
  %v131 = vsub.s32 0, %v130
  %v132 = vrot.slane %v124, %v131
  %v133 = vmul.f32 %v127, %v132
  %v134 = vadd.f32 %v123, %v133
  %v135 = vld [vmem:[%s1 + $0xa] sm:$0x1]
  %136 = vset.pattern.permute.xlu0 7
  %137 = vperm.xlu0 %136, %v51
  %v138 = vpop.permute.xlu0 %137
  %v140 = vlaneseq
  %v141 = vshrl.u32 %v140, 7
  %v142 = vsub.s32 0, %v141
  %v143 = vrot.slane %v135, %v142
  %v144 = vmul.f32 %v138, %v143
  %v145 = vadd.f32 %v134, %v144
  %v146 = vld [vmem:[%s1 + $0xb] sm:$0x1]
  %147 = vset.pattern.permute.xlu0 8
  %148 = vperm.xlu0 %147, %v51
  %v149 = vpop.permute.xlu0 %148
  %v151 = vlaneseq
  %v152 = vshrl.u32 %v151, 7
  %v153 = vsub.s32 0, %v152
  %v154 = vrot.slane %v146, %v153
  %v155 = vmul.f32 %v149, %v154
  %v156 = vadd.f32 %v145, %v155
  %v157 = vld [vmem:[%s1 + $0xc] sm:$0x1]
  %158 = vset.pattern.permute.xlu0 9
  %159 = vperm.xlu0 %158, %v51
  %v160 = vpop.permute.xlu0 %159
  %v162 = vlaneseq
  %v163 = vshrl.u32 %v162, 7
  %v164 = vsub.s32 0, %v163
  %v165 = vrot.slane %v157, %v164
  %v166 = vmul.f32 %v160, %v165
  %v167 = vadd.f32 %v156, %v166
  %v168 = vld [vmem:[%s1 + $0xd] sm:$0x1]
  %169 = vset.pattern.permute.xlu0 10
  %170 = vperm.xlu0 %169, %v51
  %v171 = vpop.permute.xlu0 %170
  %v173 = vlaneseq
  %v174 = vshrl.u32 %v173, 7
  %v175 = vsub.s32 0, %v174
  %v176 = vrot.slane %v168, %v175
  %v177 = vmul.f32 %v171, %v176
  %v178 = vadd.f32 %v167, %v177
  %v179 = vld [vmem:[%s1 + $0xe] sm:$0x1]
  %180 = vset.pattern.permute.xlu0 11
  %181 = vperm.xlu0 %180, %v51
  %v182 = vpop.permute.xlu0 %181
  %v184 = vlaneseq
  %v185 = vshrl.u32 %v184, 7
  %v186 = vsub.s32 0, %v185
  %v187 = vrot.slane %v179, %v186
  %v188 = vmul.f32 %v182, %v187
  %v189 = vadd.f32 %v178, %v188
  %v190 = vld [vmem:[%s1 + $0xf] sm:$0x1]
  %191 = vset.pattern.permute.xlu0 12
  %192 = vperm.xlu0 %191, %v51
  %v193 = vpop.permute.xlu0 %192
  %v195 = vlaneseq
  %v196 = vshrl.u32 %v195, 7
  %v197 = vsub.s32 0, %v196
  %v198 = vrot.slane %v190, %v197
  %v199 = vmul.f32 %v193, %v198
  %v200 = vadd.f32 %v189, %v199
  %v201 = vld [vmem:[%s1 + $0x10] sm:$0x1]
  %202 = vset.pattern.permute.xlu0 13
  %203 = vperm.xlu0 %202, %v51
  %v204 = vpop.permute.xlu0 %203
  %v206 = vlaneseq
  %v207 = vshrl.u32 %v206, 7
  %v208 = vsub.s32 0, %v207
  %v209 = vrot.slane %v201, %v208
  %v210 = vmul.f32 %v204, %v209
  %v211 = vadd.f32 %v200, %v210
  %v212 = vld [vmem:[%s1 + $0x11] sm:$0x1]
  %213 = vset.pattern.permute.xlu0 14
  %214 = vperm.xlu0 %213, %v51
  %v215 = vpop.permute.xlu0 %214
  %v217 = vlaneseq
  %v218 = vshrl.u32 %v217, 7
  %v219 = vsub.s32 0, %v218
  %v220 = vrot.slane %v212, %v219
  %v221 = vmul.f32 %v215, %v220
  %v222 = vadd.f32 %v211, %v221
  %v223 = vld [vmem:[%s1 + $0x12] sm:$0x1]
  %224 = vset.pattern.permute.xlu0 15
  %225 = vperm.xlu0 %224, %v51
  %v226 = vpop.permute.xlu0 %225
  %v228 = vlaneseq
  %v229 = vshrl.u32 %v228, 7
  %v230 = vsub.s32 0, %v229
  %v231 = vrot.slane %v223, %v230
  %v232 = vmul.f32 %v226, %v231
  %v233 = vadd.f32 %v222, %v232
  %v234 = vld [vmem:[%s1 + $0x13] sm:$0x1]
  %235 = vset.pattern.permute.xlu0 16
  %236 = vperm.xlu0 %235, %v51
  %v237 = vpop.permute.xlu0 %236
  %v239 = vlaneseq
  %v240 = vshrl.u32 %v239, 7
  %v241 = vsub.s32 0, %v240
  %v242 = vrot.slane %v234, %v241
  %v243 = vmul.f32 %v237, %v242
  %v244 = vadd.f32 %v233, %v243
  %v245 = vld [vmem:[%s1 + $0x14] sm:$0x1]
  %246 = vset.pattern.permute.xlu0 17
  %247 = vperm.xlu0 %246, %v51
  %v248 = vpop.permute.xlu0 %247
  %v250 = vlaneseq
  %v251 = vshrl.u32 %v250, 7
  %v252 = vsub.s32 0, %v251
  %v253 = vrot.slane %v245, %v252
  %v254 = vmul.f32 %v248, %v253
  %v255 = vadd.f32 %v244, %v254
  %v256 = vld [vmem:[%s1 + $0x15] sm:$0x1]
  %257 = vset.pattern.permute.xlu0 18
  %258 = vperm.xlu0 %257, %v51
  %v259 = vpop.permute.xlu0 %258
  %v261 = vlaneseq
  %v262 = vshrl.u32 %v261, 7
  %v263 = vsub.s32 0, %v262
  %v264 = vrot.slane %v256, %v263
  %v265 = vmul.f32 %v259, %v264
  %v266 = vadd.f32 %v255, %v265
  %v267 = vld [vmem:[%s1 + $0x16] sm:$0x1]
  %268 = vset.pattern.permute.xlu0 19
  %269 = vperm.xlu0 %268, %v51
  %v270 = vpop.permute.xlu0 %269
  %v272 = vlaneseq
  %v273 = vshrl.u32 %v272, 7
  %v274 = vsub.s32 0, %v273
  %v275 = vrot.slane %v267, %v274
  %v276 = vmul.f32 %v270, %v275
  %v277 = vadd.f32 %v266, %v276
  %v278 = vtanh.pop %v277
  %v279 = vld [vmem:[%s1 + $0x58] sm:$0x1]
  %v280 = vld [vmem:[%s1 + $0x17] sm:$0x1]
  %282 = vset.pattern.permute.xlu0 0
  %283 = vperm.xlu0 %282, %v278
  %v284 = vpop.permute.xlu0 %283
  %v286 = vlaneseq
  %v287 = vshrl.u32 %v286, 7
  %v288 = vsub.s32 0, %v287
  %v289 = vrot.slane %v280, %v288
  %v290 = vmul.f32 %v284, %v289
  %v291 = vlaneseq
  %v292 = vshrl.u32 %v291, 7
  %v293 = vsub.s32 0, %v292
  %v294 = vrot.slane %v279, %v293
  %v295 = vadd.f32 %v294, %v290
  %v296 = vld [vmem:[%s1 + $0x18] sm:$0x1]
  %297 = vset.pattern.permute.xlu0 1
  %298 = vperm.xlu0 %297, %v278
  %v299 = vpop.permute.xlu0 %298
  %v301 = vlaneseq
  %v302 = vshrl.u32 %v301, 7
  %v303 = vsub.s32 0, %v302
  %v304 = vrot.slane %v296, %v303
  %v305 = vmul.f32 %v299, %v304
  %v306 = vadd.f32 %v295, %v305
  %v307 = vld [vmem:[%s1 + $0x19] sm:$0x1]
  %308 = vset.pattern.permute.xlu0 2
  %309 = vperm.xlu0 %308, %v278
  %v310 = vpop.permute.xlu0 %309
  %v312 = vlaneseq
  %v313 = vshrl.u32 %v312, 7
  %v314 = vsub.s32 0, %v313
  %v315 = vrot.slane %v307, %v314
  %v316 = vmul.f32 %v310, %v315
  %v317 = vadd.f32 %v306, %v316
  %v318 = vld [vmem:[%s1 + $0x1a] sm:$0x1]
  %319 = vset.pattern.permute.xlu0 3
  %320 = vperm.xlu0 %319, %v278
  %v321 = vpop.permute.xlu0 %320
  %v323 = vlaneseq
  %v324 = vshrl.u32 %v323, 7
  %v325 = vsub.s32 0, %v324
  %v326 = vrot.slane %v318, %v325
  %v327 = vmul.f32 %v321, %v326
  %v328 = vadd.f32 %v317, %v327
  %v329 = vld [vmem:[%s1 + $0x1b] sm:$0x1]
  %330 = vset.pattern.permute.xlu0 4
  %331 = vperm.xlu0 %330, %v278
  %v332 = vpop.permute.xlu0 %331
  %v334 = vlaneseq
  %v335 = vshrl.u32 %v334, 7
  %v336 = vsub.s32 0, %v335
  %v337 = vrot.slane %v329, %v336
  %v338 = vmul.f32 %v332, %v337
  %v339 = vadd.f32 %v328, %v338
  %v340 = vld [vmem:[%s1 + $0x1c] sm:$0x1]
  %341 = vset.pattern.permute.xlu0 5
  %342 = vperm.xlu0 %341, %v278
  %v343 = vpop.permute.xlu0 %342
  %v345 = vlaneseq
  %v346 = vshrl.u32 %v345, 7
  %v347 = vsub.s32 0, %v346
  %v348 = vrot.slane %v340, %v347
  %v349 = vmul.f32 %v343, %v348
  %v350 = vadd.f32 %v339, %v349
  %v351 = vld [vmem:[%s1 + $0x1d] sm:$0x1]
  %352 = vset.pattern.permute.xlu0 6
  %353 = vperm.xlu0 %352, %v278
  %v354 = vpop.permute.xlu0 %353
  %v356 = vlaneseq
  %v357 = vshrl.u32 %v356, 7
  %v358 = vsub.s32 0, %v357
  %v359 = vrot.slane %v351, %v358
  %v360 = vmul.f32 %v354, %v359
  %v361 = vadd.f32 %v350, %v360
  %v362 = vld [vmem:[%s1 + $0x1e] sm:$0x1]
  %363 = vset.pattern.permute.xlu0 7
  %364 = vperm.xlu0 %363, %v278
  %v365 = vpop.permute.xlu0 %364
  %v367 = vlaneseq
  %v368 = vshrl.u32 %v367, 7
  %v369 = vsub.s32 0, %v368
  %v370 = vrot.slane %v362, %v369
  %v371 = vmul.f32 %v365, %v370
  %v372 = vadd.f32 %v361, %v371
  %v373 = vld [vmem:[%s1 + $0x1f] sm:$0x1]
  %374 = vset.pattern.permute.xlu0 8
  %375 = vperm.xlu0 %374, %v278
  %v376 = vpop.permute.xlu0 %375
  %v378 = vlaneseq
  %v379 = vshrl.u32 %v378, 7
  %v380 = vsub.s32 0, %v379
  %v381 = vrot.slane %v373, %v380
  %v382 = vmul.f32 %v376, %v381
  %v383 = vadd.f32 %v372, %v382
  %v384 = vld [vmem:[%s1 + $0x20] sm:$0x1]
  %385 = vset.pattern.permute.xlu0 9
  %386 = vperm.xlu0 %385, %v278
  %v387 = vpop.permute.xlu0 %386
  %v389 = vlaneseq
  %v390 = vshrl.u32 %v389, 7
  %v391 = vsub.s32 0, %v390
  %v392 = vrot.slane %v384, %v391
  %v393 = vmul.f32 %v387, %v392
  %v394 = vadd.f32 %v383, %v393
  %v395 = vld [vmem:[%s1 + $0x21] sm:$0x1]
  %396 = vset.pattern.permute.xlu0 10
  %397 = vperm.xlu0 %396, %v278
  %v398 = vpop.permute.xlu0 %397
  %v400 = vlaneseq
  %v401 = vshrl.u32 %v400, 7
  %v402 = vsub.s32 0, %v401
  %v403 = vrot.slane %v395, %v402
  %v404 = vmul.f32 %v398, %v403
  %v405 = vadd.f32 %v394, %v404
  %v406 = vld [vmem:[%s1 + $0x22] sm:$0x1]
  %407 = vset.pattern.permute.xlu0 11
  %408 = vperm.xlu0 %407, %v278
  %v409 = vpop.permute.xlu0 %408
  %v411 = vlaneseq
  %v412 = vshrl.u32 %v411, 7
  %v413 = vsub.s32 0, %v412
  %v414 = vrot.slane %v406, %v413
  %v415 = vmul.f32 %v409, %v414
  %v416 = vadd.f32 %v405, %v415
  %v417 = vld [vmem:[%s1 + $0x23] sm:$0x1]
  %418 = vset.pattern.permute.xlu0 12
  %419 = vperm.xlu0 %418, %v278
  %v420 = vpop.permute.xlu0 %419
  %v422 = vlaneseq
  %v423 = vshrl.u32 %v422, 7
  %v424 = vsub.s32 0, %v423
  %v425 = vrot.slane %v417, %v424
  %v426 = vmul.f32 %v420, %v425
  %v427 = vadd.f32 %v416, %v426
  %v428 = vld [vmem:[%s1 + $0x24] sm:$0x1]
  %429 = vset.pattern.permute.xlu0 13
  %430 = vperm.xlu0 %429, %v278
  %v431 = vpop.permute.xlu0 %430
  %v433 = vlaneseq
  %v434 = vshrl.u32 %v433, 7
  %v435 = vsub.s32 0, %v434
  %v436 = vrot.slane %v428, %v435
  %v437 = vmul.f32 %v431, %v436
  %v438 = vadd.f32 %v427, %v437
  %v439 = vld [vmem:[%s1 + $0x25] sm:$0x1]
  %440 = vset.pattern.permute.xlu0 14
  %441 = vperm.xlu0 %440, %v278
  %v442 = vpop.permute.xlu0 %441
  %v444 = vlaneseq
  %v445 = vshrl.u32 %v444, 7
  %v446 = vsub.s32 0, %v445
  %v447 = vrot.slane %v439, %v446
  %v448 = vmul.f32 %v442, %v447
  %v449 = vadd.f32 %v438, %v448
  %v450 = vld [vmem:[%s1 + $0x26] sm:$0x1]
  %451 = vset.pattern.permute.xlu0 15
  %452 = vperm.xlu0 %451, %v278
  %v453 = vpop.permute.xlu0 %452
  %v455 = vlaneseq
  %v456 = vshrl.u32 %v455, 7
  %v457 = vsub.s32 0, %v456
  %v458 = vrot.slane %v450, %v457
  %v459 = vmul.f32 %v453, %v458
  %v460 = vadd.f32 %v449, %v459
  %v461 = vld [vmem:[%s1 + $0x27] sm:$0x1]
  %462 = vset.pattern.permute.xlu0 16
  %463 = vperm.xlu0 %462, %v278
  %v464 = vpop.permute.xlu0 %463
  %v466 = vlaneseq
  %v467 = vshrl.u32 %v466, 7
  %v468 = vsub.s32 0, %v467
  %v469 = vrot.slane %v461, %v468
  %v470 = vmul.f32 %v464, %v469
  %v471 = vadd.f32 %v460, %v470
  %v472 = vld [vmem:[%s1 + $0x28] sm:$0x1]
  %473 = vset.pattern.permute.xlu0 17
  %474 = vperm.xlu0 %473, %v278
  %v475 = vpop.permute.xlu0 %474
  %v477 = vlaneseq
  %v478 = vshrl.u32 %v477, 7
  %v479 = vsub.s32 0, %v478
  %v480 = vrot.slane %v472, %v479
  %v481 = vmul.f32 %v475, %v480
  %v482 = vadd.f32 %v471, %v481
  %v483 = vld [vmem:[%s1 + $0x29] sm:$0x1]
  %484 = vset.pattern.permute.xlu0 18
  %485 = vperm.xlu0 %484, %v278
  %v486 = vpop.permute.xlu0 %485
  %v488 = vlaneseq
  %v489 = vshrl.u32 %v488, 7
  %v490 = vsub.s32 0, %v489
  %v491 = vrot.slane %v483, %v490
  %v492 = vmul.f32 %v486, %v491
  %v493 = vadd.f32 %v482, %v492
  %v494 = vld [vmem:[%s1 + $0x2a] sm:$0x1]
  %495 = vset.pattern.permute.xlu0 19
  %496 = vperm.xlu0 %495, %v278
  %v497 = vpop.permute.xlu0 %496
  %v499 = vlaneseq
  %v500 = vshrl.u32 %v499, 7
  %v501 = vsub.s32 0, %v500
  %v502 = vrot.slane %v494, %v501
  %v503 = vmul.f32 %v497, %v502
  %v504 = vadd.f32 %v493, %v503
  %v505 = vld [vmem:[%s1 + $0x59] sm:$0x1]
  %v506 = vld [vmem:[%s1 + $0x2b] sm:$0x1]
  %508 = vset.pattern.permute.xlu0 0
  %509 = vperm.xlu0 %508, %v504
  %v510 = vpop.permute.xlu0 %509
  %v512 = vlaneseq
  %v513 = vshrl.u32 %v512, 7
  %v514 = vsub.s32 0, %v513
  %v515 = vrot.slane %v506, %v514
  %v516 = vmul.f32 %v510, %v515
  %v517 = vlaneseq
  %v518 = vshrl.u32 %v517, 7
  %v519 = vsub.s32 0, %v518
  %v520 = vrot.slane %v505, %v519
  %v521 = vadd.f32 %v520, %v516
  %v522 = vld [vmem:[%s1 + $0x2c] sm:$0x1]
  %523 = vset.pattern.permute.xlu0 1
  %524 = vperm.xlu0 %523, %v504
  %v525 = vpop.permute.xlu0 %524
  %v527 = vlaneseq
  %v528 = vshrl.u32 %v527, 7
  %v529 = vsub.s32 0, %v528
  %v530 = vrot.slane %v522, %v529
  %v531 = vmul.f32 %v525, %v530
  %v532 = vadd.f32 %v521, %v531
  %v533 = vld [vmem:[%s1 + $0x2d] sm:$0x1]
  %534 = vset.pattern.permute.xlu0 2
  %535 = vperm.xlu0 %534, %v504
  %v536 = vpop.permute.xlu0 %535
  %v538 = vlaneseq
  %v539 = vshrl.u32 %v538, 7
  %v540 = vsub.s32 0, %v539
  %v541 = vrot.slane %v533, %v540
  %v542 = vmul.f32 %v536, %v541
  %v543 = vadd.f32 %v532, %v542
  %v544 = vtanh.pop %v543
  %v545 = vld [vmem:[%s1 + $0x5a] sm:$0x1]
  %v546 = vld [vmem:[%s1 + $0x2e] sm:$0x1]
  %548 = vset.pattern.permute.xlu0 0
  %549 = vperm.xlu0 %548, %v544
  %v550 = vpop.permute.xlu0 %549
  %v552 = vlaneseq
  %v553 = vshrl.u32 %v552, 7
  %v554 = vsub.s32 0, %v553
  %v555 = vrot.slane %v546, %v554
  %v556 = vmul.f32 %v550, %v555
  %v557 = vlaneseq
  %v558 = vshrl.u32 %v557, 7
  %v559 = vsub.s32 0, %v558
  %v560 = vrot.slane %v545, %v559
  %v561 = vadd.f32 %v560, %v556
  %v562 = vld [vmem:[%s1 + $0x2f] sm:$0x1]
  %563 = vset.pattern.permute.xlu0 1
  %564 = vperm.xlu0 %563, %v544
  %v565 = vpop.permute.xlu0 %564
  %v567 = vlaneseq
  %v568 = vshrl.u32 %v567, 7
  %v569 = vsub.s32 0, %v568
  %v570 = vrot.slane %v562, %v569
  %v571 = vmul.f32 %v565, %v570
  %v572 = vadd.f32 %v561, %v571
  %v573 = vld [vmem:[%s1 + $0x30] sm:$0x1]
  %574 = vset.pattern.permute.xlu0 2
  %575 = vperm.xlu0 %574, %v544
  %v576 = vpop.permute.xlu0 %575
  %v578 = vlaneseq
  %v579 = vshrl.u32 %v578, 7
  %v580 = vsub.s32 0, %v579
  %v581 = vrot.slane %v573, %v580
  %v582 = vmul.f32 %v576, %v581
  %v583 = vadd.f32 %v572, %v582
  %v584 = vld [vmem:[%s1 + $0x31] sm:$0x1]
  %585 = vset.pattern.permute.xlu0 3
  %586 = vperm.xlu0 %585, %v544
  %v587 = vpop.permute.xlu0 %586
  %v589 = vlaneseq
  %v590 = vshrl.u32 %v589, 7
  %v591 = vsub.s32 0, %v590
  %v592 = vrot.slane %v584, %v591
  %v593 = vmul.f32 %v587, %v592
  %v594 = vadd.f32 %v583, %v593
  %v595 = vld [vmem:[%s1 + $0x32] sm:$0x1]
  %596 = vset.pattern.permute.xlu0 4
  %597 = vperm.xlu0 %596, %v544
  %v598 = vpop.permute.xlu0 %597
  %v600 = vlaneseq
  %v601 = vshrl.u32 %v600, 7
  %v602 = vsub.s32 0, %v601
  %v603 = vrot.slane %v595, %v602
  %v604 = vmul.f32 %v598, %v603
  %v605 = vadd.f32 %v594, %v604
  %v606 = vld [vmem:[%s1 + $0x33] sm:$0x1]
  %607 = vset.pattern.permute.xlu0 5
  %608 = vperm.xlu0 %607, %v544
  %v609 = vpop.permute.xlu0 %608
  %v611 = vlaneseq
  %v612 = vshrl.u32 %v611, 7
  %v613 = vsub.s32 0, %v612
  %v614 = vrot.slane %v606, %v613
  %v615 = vmul.f32 %v609, %v614
  %v616 = vadd.f32 %v605, %v615
  %v617 = vld [vmem:[%s1 + $0x34] sm:$0x1]
  %618 = vset.pattern.permute.xlu0 6
  %619 = vperm.xlu0 %618, %v544
  %v620 = vpop.permute.xlu0 %619
  %v622 = vlaneseq
  %v623 = vshrl.u32 %v622, 7
  %v624 = vsub.s32 0, %v623
  %v625 = vrot.slane %v617, %v624
  %v626 = vmul.f32 %v620, %v625
  %v627 = vadd.f32 %v616, %v626
  %v628 = vld [vmem:[%s1 + $0x35] sm:$0x1]
  %629 = vset.pattern.permute.xlu0 7
  %630 = vperm.xlu0 %629, %v544
  %v631 = vpop.permute.xlu0 %630
  %v633 = vlaneseq
  %v634 = vshrl.u32 %v633, 7
  %v635 = vsub.s32 0, %v634
  %v636 = vrot.slane %v628, %v635
  %v637 = vmul.f32 %v631, %v636
  %v638 = vadd.f32 %v627, %v637
  %v639 = vld [vmem:[%s1 + $0x36] sm:$0x1]
  %640 = vset.pattern.permute.xlu0 8
  %641 = vperm.xlu0 %640, %v544
  %v642 = vpop.permute.xlu0 %641
  %v644 = vlaneseq
  %v645 = vshrl.u32 %v644, 7
  %v646 = vsub.s32 0, %v645
  %v647 = vrot.slane %v639, %v646
  %v648 = vmul.f32 %v642, %v647
  %v649 = vadd.f32 %v638, %v648
  %v650 = vld [vmem:[%s1 + $0x37] sm:$0x1]
  %651 = vset.pattern.permute.xlu0 9
  %652 = vperm.xlu0 %651, %v544
  %v653 = vpop.permute.xlu0 %652
  %v655 = vlaneseq
  %v656 = vshrl.u32 %v655, 7
  %v657 = vsub.s32 0, %v656
  %v658 = vrot.slane %v650, %v657
  %v659 = vmul.f32 %v653, %v658
  %v660 = vadd.f32 %v649, %v659
  %v661 = vld [vmem:[%s1 + $0x38] sm:$0x1]
  %662 = vset.pattern.permute.xlu0 10
  %663 = vperm.xlu0 %662, %v544
  %v664 = vpop.permute.xlu0 %663
  %v666 = vlaneseq
  %v667 = vshrl.u32 %v666, 7
  %v668 = vsub.s32 0, %v667
  %v669 = vrot.slane %v661, %v668
  %v670 = vmul.f32 %v664, %v669
  %v671 = vadd.f32 %v660, %v670
  %v672 = vld [vmem:[%s1 + $0x39] sm:$0x1]
  %673 = vset.pattern.permute.xlu0 11
  %674 = vperm.xlu0 %673, %v544
  %v675 = vpop.permute.xlu0 %674
  %v677 = vlaneseq
  %v678 = vshrl.u32 %v677, 7
  %v679 = vsub.s32 0, %v678
  %v680 = vrot.slane %v672, %v679
  %v681 = vmul.f32 %v675, %v680
  %v682 = vadd.f32 %v671, %v681
  %v683 = vld [vmem:[%s1 + $0x3a] sm:$0x1]
  %684 = vset.pattern.permute.xlu0 12
  %685 = vperm.xlu0 %684, %v544
  %v686 = vpop.permute.xlu0 %685
  %v688 = vlaneseq
  %v689 = vshrl.u32 %v688, 7
  %v690 = vsub.s32 0, %v689
  %v691 = vrot.slane %v683, %v690
  %v692 = vmul.f32 %v686, %v691
  %v693 = vadd.f32 %v682, %v692
  %v694 = vld [vmem:[%s1 + $0x3b] sm:$0x1]
  %695 = vset.pattern.permute.xlu0 13
  %696 = vperm.xlu0 %695, %v544
  %v697 = vpop.permute.xlu0 %696
  %v699 = vlaneseq
  %v700 = vshrl.u32 %v699, 7
  %v701 = vsub.s32 0, %v700
  %v702 = vrot.slane %v694, %v701
  %v703 = vmul.f32 %v697, %v702
  %v704 = vadd.f32 %v693, %v703
  %v705 = vld [vmem:[%s1 + $0x3c] sm:$0x1]
  %706 = vset.pattern.permute.xlu0 14
  %707 = vperm.xlu0 %706, %v544
  %v708 = vpop.permute.xlu0 %707
  %v710 = vlaneseq
  %v711 = vshrl.u32 %v710, 7
  %v712 = vsub.s32 0, %v711
  %v713 = vrot.slane %v705, %v712
  %v714 = vmul.f32 %v708, %v713
  %v715 = vadd.f32 %v704, %v714
  %v716 = vld [vmem:[%s1 + $0x3d] sm:$0x1]
  %717 = vset.pattern.permute.xlu0 15
  %718 = vperm.xlu0 %717, %v544
  %v719 = vpop.permute.xlu0 %718
  %v721 = vlaneseq
  %v722 = vshrl.u32 %v721, 7
  %v723 = vsub.s32 0, %v722
  %v724 = vrot.slane %v716, %v723
  %v725 = vmul.f32 %v719, %v724
  %v726 = vadd.f32 %v715, %v725
  %v727 = vld [vmem:[%s1 + $0x3e] sm:$0x1]
  %728 = vset.pattern.permute.xlu0 16
  %729 = vperm.xlu0 %728, %v544
  %v730 = vpop.permute.xlu0 %729
  %v732 = vlaneseq
  %v733 = vshrl.u32 %v732, 7
  %v734 = vsub.s32 0, %v733
  %v735 = vrot.slane %v727, %v734
  %v736 = vmul.f32 %v730, %v735
  %v737 = vadd.f32 %v726, %v736
  %v738 = vld [vmem:[%s1 + $0x3f] sm:$0x1]
  %739 = vset.pattern.permute.xlu0 17
  %740 = vperm.xlu0 %739, %v544
  %v741 = vpop.permute.xlu0 %740
  %v743 = vlaneseq
  %v744 = vshrl.u32 %v743, 7
  %v745 = vsub.s32 0, %v744
  %v746 = vrot.slane %v738, %v745
  %v747 = vmul.f32 %v741, %v746
  %v748 = vadd.f32 %v737, %v747
  %v749 = vld [vmem:[%s1 + $0x40] sm:$0x1]
  %750 = vset.pattern.permute.xlu0 18
  %751 = vperm.xlu0 %750, %v544
  %v752 = vpop.permute.xlu0 %751
  %v754 = vlaneseq
  %v755 = vshrl.u32 %v754, 7
  %v756 = vsub.s32 0, %v755
  %v757 = vrot.slane %v749, %v756
  %v758 = vmul.f32 %v752, %v757
  %v759 = vadd.f32 %v748, %v758
  %v760 = vld [vmem:[%s1 + $0x41] sm:$0x1]
  %761 = vset.pattern.permute.xlu0 19
  %762 = vperm.xlu0 %761, %v544
  %v763 = vpop.permute.xlu0 %762
  %v765 = vlaneseq
  %v766 = vshrl.u32 %v765, 7
  %v767 = vsub.s32 0, %v766
  %v768 = vrot.slane %v760, %v767
  %v769 = vmul.f32 %v763, %v768
  %v770 = vadd.f32 %v759, %v769
  %v771 = vtanh.pop %v770
  %v772 = vld [vmem:[%s1 + $0x5b] sm:$0x1]
  %v773 = vld [vmem:[%s1 + $0x42] sm:$0x1]
  %775 = vset.pattern.permute.xlu0 0
  %776 = vperm.xlu0 %775, %v771
  %v777 = vpop.permute.xlu0 %776
  %v779 = vlaneseq
  %v780 = vshrl.u32 %v779, 7
  %v781 = vsub.s32 0, %v780
  %v782 = vrot.slane %v773, %v781
  %v783 = vmul.f32 %v777, %v782
  %v784 = vlaneseq
  %v785 = vshrl.u32 %v784, 7
  %v786 = vsub.s32 0, %v785
  %v787 = vrot.slane %v772, %v786
  %v788 = vadd.f32 %v787, %v783
  %v789 = vld [vmem:[%s1 + $0x43] sm:$0x1]
  %790 = vset.pattern.permute.xlu0 1
  %791 = vperm.xlu0 %790, %v771
  %v792 = vpop.permute.xlu0 %791
  %v794 = vlaneseq
  %v795 = vshrl.u32 %v794, 7
  %v796 = vsub.s32 0, %v795
  %v797 = vrot.slane %v789, %v796
  %v798 = vmul.f32 %v792, %v797
  %v799 = vadd.f32 %v788, %v798
  %v800 = vld [vmem:[%s1 + $0x44] sm:$0x1]
  %801 = vset.pattern.permute.xlu0 2
  %802 = vperm.xlu0 %801, %v771
  %v803 = vpop.permute.xlu0 %802
  %v805 = vlaneseq
  %v806 = vshrl.u32 %v805, 7
  %v807 = vsub.s32 0, %v806
  %v808 = vrot.slane %v800, %v807
  %v809 = vmul.f32 %v803, %v808
  %v810 = vadd.f32 %v799, %v809
  %v811 = vld [vmem:[%s1 + $0x45] sm:$0x1]
  %812 = vset.pattern.permute.xlu0 3
  %813 = vperm.xlu0 %812, %v771
  %v814 = vpop.permute.xlu0 %813
  %v816 = vlaneseq
  %v817 = vshrl.u32 %v816, 7
  %v818 = vsub.s32 0, %v817
  %v819 = vrot.slane %v811, %v818
  %v820 = vmul.f32 %v814, %v819
  %v821 = vadd.f32 %v810, %v820
  %v822 = vld [vmem:[%s1 + $0x46] sm:$0x1]
  %823 = vset.pattern.permute.xlu0 4
  %824 = vperm.xlu0 %823, %v771
  %v825 = vpop.permute.xlu0 %824
  %v827 = vlaneseq
  %v828 = vshrl.u32 %v827, 7
  %v829 = vsub.s32 0, %v828
  %v830 = vrot.slane %v822, %v829
  %v831 = vmul.f32 %v825, %v830
  %v832 = vadd.f32 %v821, %v831
  %v833 = vld [vmem:[%s1 + $0x47] sm:$0x1]
  %834 = vset.pattern.permute.xlu0 5
  %835 = vperm.xlu0 %834, %v771
  %v836 = vpop.permute.xlu0 %835
  %v838 = vlaneseq
  %v839 = vshrl.u32 %v838, 7
  %v840 = vsub.s32 0, %v839
  %v841 = vrot.slane %v833, %v840
  %v842 = vmul.f32 %v836, %v841
  %v843 = vadd.f32 %v832, %v842
  %v844 = vld [vmem:[%s1 + $0x48] sm:$0x1]
  %845 = vset.pattern.permute.xlu0 6
  %846 = vperm.xlu0 %845, %v771
  %v847 = vpop.permute.xlu0 %846
  %v849 = vlaneseq
  %v850 = vshrl.u32 %v849, 7
  %v851 = vsub.s32 0, %v850
  %v852 = vrot.slane %v844, %v851
  %v853 = vmul.f32 %v847, %v852
  %v854 = vadd.f32 %v843, %v853
  %v855 = vld [vmem:[%s1 + $0x49] sm:$0x1]
  %856 = vset.pattern.permute.xlu0 7
  %857 = vperm.xlu0 %856, %v771
  %v858 = vpop.permute.xlu0 %857
  %v860 = vlaneseq
  %v861 = vshrl.u32 %v860, 7
  %v862 = vsub.s32 0, %v861
  %v863 = vrot.slane %v855, %v862
  %v864 = vmul.f32 %v858, %v863
  %v865 = vadd.f32 %v854, %v864
  %v866 = vld [vmem:[%s1 + $0x4a] sm:$0x1]
  %867 = vset.pattern.permute.xlu0 8
  %868 = vperm.xlu0 %867, %v771
  %v869 = vpop.permute.xlu0 %868
  %v871 = vlaneseq
  %v872 = vshrl.u32 %v871, 7
  %v873 = vsub.s32 0, %v872
  %v874 = vrot.slane %v866, %v873
  %v875 = vmul.f32 %v869, %v874
  %v876 = vadd.f32 %v865, %v875
  %v877 = vld [vmem:[%s1 + $0x4b] sm:$0x1]
  %878 = vset.pattern.permute.xlu0 9
  %879 = vperm.xlu0 %878, %v771
  %v880 = vpop.permute.xlu0 %879
  %v882 = vlaneseq
  %v883 = vshrl.u32 %v882, 7
  %v884 = vsub.s32 0, %v883
  %v885 = vrot.slane %v877, %v884
  %v886 = vmul.f32 %v880, %v885
  %v887 = vadd.f32 %v876, %v886
  %v888 = vld [vmem:[%s1 + $0x4c] sm:$0x1]
  %889 = vset.pattern.permute.xlu0 10
  %890 = vperm.xlu0 %889, %v771
  %v891 = vpop.permute.xlu0 %890
  %v893 = vlaneseq
  %v894 = vshrl.u32 %v893, 7
  %v895 = vsub.s32 0, %v894
  %v896 = vrot.slane %v888, %v895
  %v897 = vmul.f32 %v891, %v896
  %v898 = vadd.f32 %v887, %v897
  %v899 = vld [vmem:[%s1 + $0x4d] sm:$0x1]
  %900 = vset.pattern.permute.xlu0 11
  %901 = vperm.xlu0 %900, %v771
  %v902 = vpop.permute.xlu0 %901
  %v904 = vlaneseq
  %v905 = vshrl.u32 %v904, 7
  %v906 = vsub.s32 0, %v905
  %v907 = vrot.slane %v899, %v906
  %v908 = vmul.f32 %v902, %v907
  %v909 = vadd.f32 %v898, %v908
  %v910 = vld [vmem:[%s1 + $0x4e] sm:$0x1]
  %911 = vset.pattern.permute.xlu0 12
  %912 = vperm.xlu0 %911, %v771
  %v913 = vpop.permute.xlu0 %912
  %v915 = vlaneseq
  %v916 = vshrl.u32 %v915, 7
  %v917 = vsub.s32 0, %v916
  %v918 = vrot.slane %v910, %v917
  %v919 = vmul.f32 %v913, %v918
  %v920 = vadd.f32 %v909, %v919
  %v921 = vld [vmem:[%s1 + $0x4f] sm:$0x1]
  %922 = vset.pattern.permute.xlu0 13
  %923 = vperm.xlu0 %922, %v771
  %v924 = vpop.permute.xlu0 %923
  %v926 = vlaneseq
  %v927 = vshrl.u32 %v926, 7
  %v928 = vsub.s32 0, %v927
  %v929 = vrot.slane %v921, %v928
  %v930 = vmul.f32 %v924, %v929
  %v931 = vadd.f32 %v920, %v930
  %v932 = vld [vmem:[%s1 + $0x50] sm:$0x1]
  %933 = vset.pattern.permute.xlu0 14
  %934 = vperm.xlu0 %933, %v771
  %v935 = vpop.permute.xlu0 %934
  %v937 = vlaneseq
  %v938 = vshrl.u32 %v937, 7
  %v939 = vsub.s32 0, %v938
  %v940 = vrot.slane %v932, %v939
  %v941 = vmul.f32 %v935, %v940
  %v942 = vadd.f32 %v931, %v941
  %v943 = vld [vmem:[%s1 + $0x51] sm:$0x1]
  %944 = vset.pattern.permute.xlu0 15
  %945 = vperm.xlu0 %944, %v771
  %v946 = vpop.permute.xlu0 %945
  %v948 = vlaneseq
  %v949 = vshrl.u32 %v948, 7
  %v950 = vsub.s32 0, %v949
  %v951 = vrot.slane %v943, %v950
  %v952 = vmul.f32 %v946, %v951
  %v953 = vadd.f32 %v942, %v952
  %v954 = vld [vmem:[%s1 + $0x52] sm:$0x1]
  %955 = vset.pattern.permute.xlu0 16
  %956 = vperm.xlu0 %955, %v771
  %v957 = vpop.permute.xlu0 %956
  %v959 = vlaneseq
  %v960 = vshrl.u32 %v959, 7
  %v961 = vsub.s32 0, %v960
  %v962 = vrot.slane %v954, %v961
  %v963 = vmul.f32 %v957, %v962
  %v964 = vadd.f32 %v953, %v963
  %v965 = vld [vmem:[%s1 + $0x53] sm:$0x1]
  %966 = vset.pattern.permute.xlu0 17
  %967 = vperm.xlu0 %966, %v771
  %v968 = vpop.permute.xlu0 %967
  %v970 = vlaneseq
  %v971 = vshrl.u32 %v970, 7
  %v972 = vsub.s32 0, %v971
  %v973 = vrot.slane %v965, %v972
  %v974 = vmul.f32 %v968, %v973
  %v975 = vadd.f32 %v964, %v974
  %v976 = vld [vmem:[%s1 + $0x54] sm:$0x1]
  %977 = vset.pattern.permute.xlu0 18
  %978 = vperm.xlu0 %977, %v771
  %v979 = vpop.permute.xlu0 %978
  %v981 = vlaneseq
  %v982 = vshrl.u32 %v981, 7
  %v983 = vsub.s32 0, %v982
  %v984 = vrot.slane %v976, %v983
  %v985 = vmul.f32 %v979, %v984
  %v986 = vadd.f32 %v975, %v985
  %v987 = vld [vmem:[%s1 + $0x55] sm:$0x1]
  %988 = vset.pattern.permute.xlu0 19
  %989 = vperm.xlu0 %988, %v771
  %v990 = vpop.permute.xlu0 %989
  %v992 = vlaneseq
  %v993 = vshrl.u32 %v992, 7
  %v994 = vsub.s32 0, %v993
  %v995 = vrot.slane %v987, %v994
  %v996 = vmul.f32 %v990, %v995
  %v997 = vadd.f32 %v986, %v996
  %v998 = vsub.f32 %v997, %v11
  %v999 = vmul.f32 %v998, %v998
  %vm1000 = vcmask 23552
  %v1001 = vsel %vm1000, %v999, 0.0
  %1002 = vadd.xlane.f32.xlu0 %v1001
  %v1003 = vpop.xlane.xlu0 %1002
  %v1004 = vrot.slane %v1003, 4
  %v1005 = vadd.f32 %v1003, %v1004
  %v1006 = vrot.slane %v1005, 2
  %v1007 = vadd.f32 %v1005, %v1006
  %v1008 = vrot.slane %v1007, 1
  %v1009 = vadd.f32 %v1007, %v1008
  %s1010 = vtos %v1009
  %v1011 = vadd.f32 %v504, 0.0
  %s1012 = vtos %v1011
  %1014 = vrot.lane.b32.xlu0 %v1011, 127
  %v1015 = vpop.permute.xlu0 %1014
  %s1017 = vtos %v1015
  %1018 = vrot.lane.b32.xlu0 %v1011, 126
  %v1019 = vpop.permute.xlu0 %1018
  %s1021 = vtos %v1019
  %v1022 = vlaneseq
  %v1023 = vand.u32 %v1022, 127
  %vm1024 = vcmp.eq.s32.totalorder %v1023, 0
  %v1025 = vstv %s1012
  %v1026 = vsel %vm1024, %v1025, 0.0
  %vm1027 = vcmp.eq.s32.totalorder %v1023, 1
  %v1028 = vstv %s1017
  %v1029 = vsel %vm1027, %v1028, 0.0
  %v1030 = vadd.f32 %v1026, %v1029
  %vm1031 = vcmp.eq.s32.totalorder %v1023, 2
  %v1032 = vstv %s1021
  %v1033 = vsel %vm1031, %v1032, 0.0
  %v1034 = vadd.f32 %v1030, %v1033
  %vm1035 = vcmp.eq.s32.totalorder %v1023, 3
  %v1036 = vstv %s1010
  %v1037 = vsel %vm1035, %v1036, 0.0
  %v1038 = vadd.f32 %v1034, %v1037
  %vm1039 = vcmask 24576
  %1040 = vst.msk [vmem:[%s2] sm:$0x1] %vm1039, %v1038
  // Predicated region
  $region10: #{linearnet_forward.1} parent=0 // pred_check
    _
  $region11: #{linearnet_forward.1} parent=0 // pred_check_branch
    %1042 = sbr.rel (0) target = $region13
  $region12: #{linearnet_forward.1} parent=0 // pred_region
    _
  $region13: #{linearnet_forward.1} parent=0 // pred_fallthru
    _
  // Predicated region
  $region14: #{linearnet_forward.1} parent=0 // pred_check
    _
  $region15: #{linearnet_forward.1} parent=0 // pred_check_branch
    %1044 = sbr.rel (0) target = $region17
  $region16: #{linearnet_forward.1} parent=0 // pred_region
    _
  $region17: #{linearnet_forward.1} parent=0 // pred_fallthru
    _

</llo_original>
